<compile_context>
chip_gen: v7x
topology: tpu7x:2x2x1
jax: 0.10.0
libtpu: 0.0.40
codegen_flags: <defaults>
</compile_context>

<pallas_src>
import jax
import jax.numpy as jnp
from jax.experimental import pallas as pl
from jax.experimental.pallas import tpu as pltpu

LANE = 128  # lane-padding target for narrow output layers


def _decoder_kernel(z_ref, c_ref,
                    w1z_ref, w1c_ref, b1_ref,
                    w2_ref, b2_ref,
                    w3_ref, b3_ref,
                    w4_ref, b4_ref,
                    w5_ref, b5_ref,
                    out_ref):
    bf16 = jnp.bfloat16
    f32 = jnp.float32

    # Layer 1 without a z/c concat: h = z @ W1[:nz] + c @ W1[nz:] + b1
    h = (jnp.dot(z_ref[...].astype(bf16), w1z_ref[...], preferred_element_type=f32)
         + jnp.dot(c_ref[...].astype(bf16), w1c_ref[...], preferred_element_type=f32)
         + b1_ref[...])
    h = jnp.maximum(h, 0.0)

    # Layers 2..4 (w4 output lane-padded to 128; padded cols stay exactly 0 after ReLU)
    for w_ref, b_ref in ((w2_ref, b2_ref), (w3_ref, b3_ref), (w4_ref, b4_ref)):
        h = jnp.dot(h.astype(bf16), w_ref[...], preferred_element_type=f32) + b_ref[...]
        h = jnp.maximum(h, 0.0)

    # Layer 5 (lane-padded output) + sigmoid via exp + approx reciprocal (both on EUP)
    logits = jnp.dot(h.astype(bf16), w5_ref[...], preferred_element_type=f32) + b5_ref[...]
    out_ref[...] = pl.reciprocal(1.0 + jnp.exp(-logits), approx=True).astype(out_ref.dtype)


def _round_up(x, m):
    return ((x + m - 1) // m) * m


def cort_subcort_decoder_forward(z, c, params, *, batch_tile=128):
    """z: (B, n_latents), c: (B, cond_shape) -> (B, m1_data_shape) float32."""
    z = z.astype(jnp.float32)
    c = c.astype(jnp.float32)
    B, nz = z.shape
    nc = c.shape[1]
    m1 = params["m1_data_shape"]
    out_pad = params["w5"].shape[1]  # lane-padded output width (128)

    # Adaptive batch tile: multiple of 8 sublanes, no larger than the padded batch.
    tb = max(8, min(_round_up(batch_tile, 8), _round_up(B, 8)))
    n_tiles = pl.cdiv(B, tb)
    B_pad = tb * n_tiles
    if B_pad != B:  # pad batch to a multiple of the tile (glue; sliced off below)
        z = jnp.pad(z, ((0, B_pad - B), (0, 0)))
        c = jnp.pad(c, ((0, B_pad - B), (0, 0)))

    def resident(shape):  # same block for every grid step -> fetched once, stays in VMEM
        return pl.BlockSpec(shape, lambda i: (0, 0))

    in_specs = [
        pl.BlockSpec((tb, nz), lambda i: (i, 0)),
        pl.BlockSpec((tb, nc), lambda i: (i, 0)),
        resident(params["w1z"].shape), resident(params["w1c"].shape), resident(params["b1"].shape),
        resident(params["w2"].shape), resident(params["b2"].shape),
        resident(params["w3"].shape), resident(params["b3"].shape),
        resident(params["w4"].shape), resident(params["b4"].shape),
        resident(params["w5"].shape), resident(params["b5"].shape),
    ]
    out_specs = pl.BlockSpec((tb, out_pad), lambda i: (i, 0))

    # Advisory cost estimate for XLA scheduling around the custom call.
    d1 = params["w1z"].shape[1]
    flops = 2 * B_pad * (nz * d1 + nc * d1
                         + params["w2"].shape[0] * params["w2"].shape[1]
                         + params["w3"].shape[0] * params["w3"].shape[1]
                         + params["w4"].shape[0] * params["w4"].shape[1]
                         + params["w5"].shape[0] * params["w5"].shape[1])
    weight_bytes = sum(int(params[k].size) * params[k].dtype.itemsize
                       for k in ("w1z", "w1c", "w2", "w3", "w4", "w5",
                                 "b1", "b2", "b3", "b4", "b5"))
    bytes_accessed = weight_bytes + B_pad * (nz + nc) * 4 + B_pad * out_pad * 4
    cost = pl.CostEstimate(flops=flops,
                           transcendentals=B_pad * out_pad,
                           bytes_accessed=bytes_accessed)

    out = pl.pallas_call(
        _decoder_kernel,
        grid=(n_tiles,),
        out_shape=jax.ShapeDtypeStruct((B_pad, out_pad), jnp.float32),
        in_specs=in_specs,
        out_specs=out_specs,
        compiler_params=pltpu.CompilerParams(
            dimension_semantics=("parallel",),      # shards batch tiles across TCs (v7x)
            vmem_limit_bytes=32 * 1024 * 1024),
        cost_estimate=cost,
    )(z, c,
      params["w1z"], params["w1c"], params["b1"],
      params["w2"], params["b2"],
      params["w3"], params["b3"],
      params["w4"], params["b4"],
      params["w5"], params["b5"])

    return out[:B, :m1]


def init_params(key, n_latents, m1_data_shape, cond_shape):
    """nn.Linear-style init (+/- 1/sqrt(fan_in)); weights stored (in, out) bf16,
    biases (1, out) f32; fc1 split into z/c halves; fc4/fc5 lane-padded to 128."""
    decoder_shape = n_latents + cond_shape
    dims = [decoder_shape, 512, 256, 128, 64, m1_data_shape]
    raw = {}
    for i in range(5):
        fan_in, fan_out = dims[i], dims[i + 1]
        key, kw, kb = jax.random.split(key, 3)
        bound = 1.0 / (fan_in ** 0.5)
        raw[f"w{i+1}"] = jax.random.uniform(kw, (fan_in, fan_out), jnp.float32, -bound, bound)
        raw[f"b{i+1}"] = jax.random.uniform(kb, (1, fan_out), jnp.float32, -bound, bound)

    def pad_cols(a, to):
        return jnp.pad(a, ((0, 0), (0, to - a.shape[1])))

    def pad_rows(a, to):
        return jnp.pad(a, ((0, to - a.shape[0]), (0, 0)))

    params = {"m1_data_shape": m1_data_shape}
    params["w1z"] = raw["w1"][:n_latents].astype(jnp.bfloat16)
    params["w1c"] = raw["w1"][n_latents:].astype(jnp.bfloat16)
    params["b1"] = raw["b1"]
    params["w2"] = raw["w2"].astype(jnp.bfloat16)
    params["b2"] = raw["b2"]
    params["w3"] = raw["w3"].astype(jnp.bfloat16)
    params["b3"] = raw["b3"]
    params["w4"] = pad_cols(raw["w4"], LANE).astype(jnp.bfloat16)   # 64 -> 128 cols (zeros)
    params["b4"] = pad_cols(raw["b4"], LANE)
    params["w5"] = pad_cols(pad_rows(raw["w5"], LANE), LANE).astype(jnp.bfloat16)
    params["b5"] = pad_cols(raw["b5"], LANE)
    return params


def reference_forward(z, c, params):
    """Pure-JAX reference mirroring the kernel's math (bf16 dot inputs, f32 accum)."""
    bf16, f32 = jnp.bfloat16, jnp.float32
    h = (jnp.dot(z.astype(bf16), params["w1z"], preferred_element_type=f32)
         + jnp.dot(c.astype(bf16), params["w1c"], preferred_element_type=f32)
         + params["b1"])
    h = jnp.maximum(h, 0.0)
    for i in (2, 3, 4):
        h = jnp.dot(h.astype(bf16), params[f"w{i}"], preferred_element_type=f32) + params[f"b{i}"]
        h = jnp.maximum(h, 0.0)
    logits = jnp.dot(h.astype(bf16), params["w5"], preferred_element_type=f32) + params["b5"]
    return jax.nn.sigmoid(logits)[:, :params["m1_data_shape"]]


if __name__ == "__main__":
    n_latents = 16
    cond_shape = 16
    m1_data_shape = 32
    batch = 48  # deliberately not a multiple of 8-aligned tiles

    key = jax.random.PRNGKey(0)
    kp, kz, kc = jax.random.split(key, 3)
    params = init_params(kp, n_latents, m1_data_shape, cond_shape)

    z = jax.random.normal(kz, (batch, n_latents), jnp.float32)
    c = jax.random.normal(kc, (batch, cond_shape), jnp.float32)

    out = cort_subcort_decoder_forward(z, c, params, batch_tile=128)
    out = jax.block_until_ready(out)

    ref = reference_forward(z, c, params)
    assert out.shape == (batch, m1_data_shape)
    assert jnp.allclose(out, ref, atol=5e-3, rtol=5e-3), (
        f"mismatch vs JAX reference, max abs diff = {jnp.max(jnp.abs(out - ref))}")

    print("KERNEL_OK")
</pallas_src>

<mosaic_0001>
module attributes {stable_mosaic.version = 11 : i64} {
  func.func @_decoder_kernel(%arg0: i32, %arg1: memref<48x16xf32, #tpu.memory_space<vmem>>, %arg2: memref<48x16xf32, #tpu.memory_space<vmem>>, %arg3: memref<16x512xbf16, #tpu.memory_space<vmem>>, %arg4: memref<16x512xbf16, #tpu.memory_space<vmem>>, %arg5: memref<1x512xf32, #tpu.memory_space<vmem>>, %arg6: memref<512x256xbf16, #tpu.memory_space<vmem>>, %arg7: memref<1x256xf32, #tpu.memory_space<vmem>>, %arg8: memref<256x128xbf16, #tpu.memory_space<vmem>>, %arg9: memref<1x128xf32, #tpu.memory_space<vmem>>, %arg10: memref<128x128xbf16, #tpu.memory_space<vmem>>, %arg11: memref<1x128xf32, #tpu.memory_space<vmem>>, %arg12: memref<128x128xbf16, #tpu.memory_space<vmem>>, %arg13: memref<1x128xf32, #tpu.memory_space<vmem>>, %arg14: memref<48x128xf32, #tpu.memory_space<vmem>>) attributes {dimension_semantics = [#tpu.dimension_semantics<parallel>], iteration_bounds = array<i64: 1>, scalar_prefetch = 0 : i64, scratch_operands = 0 : i64, tpu.core_type = #tpu.core_type<tc>, window_params = [{transform_indices = @transform_0, window_bounds = array<i64: 48, 16>}, {transform_indices = @transform_1, window_bounds = array<i64: 48, 16>}, {pipeline_mode = #tpu.pipeline_mode<synchronous>, transform_indices = @transform_2, window_bounds = array<i64: 16, 512>}, {pipeline_mode = #tpu.pipeline_mode<synchronous>, transform_indices = @transform_3, window_bounds = array<i64: 16, 512>}, {pipeline_mode = #tpu.pipeline_mode<synchronous>, transform_indices = @transform_4, window_bounds = array<i64: 1, 512>}, {pipeline_mode = #tpu.pipeline_mode<synchronous>, transform_indices = @transform_5, window_bounds = array<i64: 512, 256>}, {pipeline_mode = #tpu.pipeline_mode<synchronous>, transform_indices = @transform_6, window_bounds = array<i64: 1, 256>}, {pipeline_mode = #tpu.pipeline_mode<synchronous>, transform_indices = @transform_7, window_bounds = array<i64: 256, 128>}, {pipeline_mode = #tpu.pipeline_mode<synchronous>, transform_indices = @transform_8, window_bounds = array<i64: 1, 128>}, {pipeline_mode = #tpu.pipeline_mode<synchronous>, transform_indices = @transform_9, window_bounds = array<i64: 128, 128>}, {pipeline_mode = #tpu.pipeline_mode<synchronous>, transform_indices = @transform_10, window_bounds = array<i64: 1, 128>}, {pipeline_mode = #tpu.pipeline_mode<synchronous>, transform_indices = @transform_11, window_bounds = array<i64: 128, 128>}, {pipeline_mode = #tpu.pipeline_mode<synchronous>, transform_indices = @transform_12, window_bounds = array<i64: 1, 128>}, {transform_indices = @transform_13, window_bounds = array<i64: 48, 128>}]} {
    %c0 = arith.constant 0 : index
    %c0_0 = arith.constant 0 : index
    %0 = vector.load %arg1[%c0, %c0_0] : memref<48x16xf32, #tpu.memory_space<vmem>>, vector<48x16xf32>
    %1 = arith.truncf %0 : vector<48x16xf32> to vector<48x16xbf16>
    %c0_1 = arith.constant 0 : index
    %c0_2 = arith.constant 0 : index
    %2 = vector.load %arg3[%c0_1, %c0_2] : memref<16x512xbf16, #tpu.memory_space<vmem>>, vector<16x512xbf16>
    %cst = arith.constant dense<0.000000e+00> : vector<48x512xf32>
    %3 = tpu.matmul %1, %2, %cst {dimension_numbers = #tpu.dot_dimension_numbers<[1], [0], [0], [1], [0, 0, 1, 1], [], []>} : vector<48x16xbf16>, vector<16x512xbf16>, vector<48x512xf32> -> vector<48x512xf32>
    %c0_3 = arith.constant 0 : index
    %c0_4 = arith.constant 0 : index
    %4 = vector.load %arg2[%c0_3, %c0_4] : memref<48x16xf32, #tpu.memory_space<vmem>>, vector<48x16xf32>
    %5 = arith.truncf %4 : vector<48x16xf32> to vector<48x16xbf16>
    %c0_5 = arith.constant 0 : index
    %c0_6 = arith.constant 0 : index
    %6 = vector.load %arg4[%c0_5, %c0_6] : memref<16x512xbf16, #tpu.memory_space<vmem>>, vector<16x512xbf16>
    %cst_7 = arith.constant dense<0.000000e+00> : vector<48x512xf32>
    %7 = tpu.matmul %5, %6, %cst_7 {dimension_numbers = #tpu.dot_dimension_numbers<[1], [0], [0], [1], [0, 0, 1, 1], [], []>} : vector<48x16xbf16>, vector<16x512xbf16>, vector<48x512xf32> -> vector<48x512xf32>
    %8 = arith.addf %3, %7 : vector<48x512xf32>
    %c0_8 = arith.constant 0 : index
    %c0_9 = arith.constant 0 : index
    %9 = vector.load %arg5[%c0_8, %c0_9] : memref<1x512xf32, #tpu.memory_space<vmem>>, vector<1x512xf32>
    %10 = vector.broadcast %9 : vector<1x512xf32> to vector<48x512xf32>
    %11 = arith.addf %8, %10 : vector<48x512xf32>
    %cst_10 = arith.constant 0.000000e+00 : f32
    %12 = vector.broadcast %cst_10 : f32 to vector<48x512xf32>
    %13 = arith.maximumf %11, %12 : vector<48x512xf32>
    %14 = arith.truncf %13 : vector<48x512xf32> to vector<48x512xbf16>
    %c0_11 = arith.constant 0 : index
    %c0_12 = arith.constant 0 : index
    %15 = vector.load %arg6[%c0_11, %c0_12] : memref<512x256xbf16, #tpu.memory_space<vmem>>, vector<512x256xbf16>
    %cst_13 = arith.constant dense<0.000000e+00> : vector<48x256xf32>
    %16 = tpu.matmul %14, %15, %cst_13 {dimension_numbers = #tpu.dot_dimension_numbers<[1], [0], [0], [1], [0, 0, 1, 1], [], []>} : vector<48x512xbf16>, vector<512x256xbf16>, vector<48x256xf32> -> vector<48x256xf32>
    %c0_14 = arith.constant 0 : index
    %c0_15 = arith.constant 0 : index
    %17 = vector.load %arg7[%c0_14, %c0_15] : memref<1x256xf32, #tpu.memory_space<vmem>>, vector<1x256xf32>
    %18 = vector.broadcast %17 : vector<1x256xf32> to vector<48x256xf32>
    %19 = arith.addf %16, %18 : vector<48x256xf32>
    %cst_16 = arith.constant 0.000000e+00 : f32
    %20 = vector.broadcast %cst_16 : f32 to vector<48x256xf32>
    %21 = arith.maximumf %19, %20 : vector<48x256xf32>
    %22 = arith.truncf %21 : vector<48x256xf32> to vector<48x256xbf16>
    %c0_17 = arith.constant 0 : index
    %c0_18 = arith.constant 0 : index
    %23 = vector.load %arg8[%c0_17, %c0_18] : memref<256x128xbf16, #tpu.memory_space<vmem>>, vector<256x128xbf16>
    %cst_19 = arith.constant dense<0.000000e+00> : vector<48x128xf32>
    %24 = tpu.matmul %22, %23, %cst_19 {dimension_numbers = #tpu.dot_dimension_numbers<[1], [0], [0], [1], [0, 0, 1, 1], [], []>} : vector<48x256xbf16>, vector<256x128xbf16>, vector<48x128xf32> -> vector<48x128xf32>
    %c0_20 = arith.constant 0 : index
    %c0_21 = arith.constant 0 : index
    %25 = vector.load %arg9[%c0_20, %c0_21] : memref<1x128xf32, #tpu.memory_space<vmem>>, vector<1x128xf32>
    %26 = vector.broadcast %25 : vector<1x128xf32> to vector<48x128xf32>
    %27 = arith.addf %24, %26 : vector<48x128xf32>
    %cst_22 = arith.constant 0.000000e+00 : f32
    %28 = vector.broadcast %cst_22 : f32 to vector<48x128xf32>
    %29 = arith.maximumf %27, %28 : vector<48x128xf32>
    %30 = arith.truncf %29 : vector<48x128xf32> to vector<48x128xbf16>
    %c0_23 = arith.constant 0 : index
    %c0_24 = arith.constant 0 : index
    %31 = vector.load %arg10[%c0_23, %c0_24] : memref<128x128xbf16, #tpu.memory_space<vmem>>, vector<128x128xbf16>
    %cst_25 = arith.constant dense<0.000000e+00> : vector<48x128xf32>
    %32 = tpu.matmul %30, %31, %cst_25 {dimension_numbers = #tpu.dot_dimension_numbers<[1], [0], [0], [1], [0, 0, 1, 1], [], []>} : vector<48x128xbf16>, vector<128x128xbf16>, vector<48x128xf32> -> vector<48x128xf32>
    %c0_26 = arith.constant 0 : index
    %c0_27 = arith.constant 0 : index
    %33 = vector.load %arg11[%c0_26, %c0_27] : memref<1x128xf32, #tpu.memory_space<vmem>>, vector<1x128xf32>
    %34 = vector.broadcast %33 : vector<1x128xf32> to vector<48x128xf32>
    %35 = arith.addf %32, %34 : vector<48x128xf32>
    %cst_28 = arith.constant 0.000000e+00 : f32
    %36 = vector.broadcast %cst_28 : f32 to vector<48x128xf32>
    %37 = arith.maximumf %35, %36 : vector<48x128xf32>
    %38 = arith.truncf %37 : vector<48x128xf32> to vector<48x128xbf16>
    %c0_29 = arith.constant 0 : index
    %c0_30 = arith.constant 0 : index
    %39 = vector.load %arg12[%c0_29, %c0_30] : memref<128x128xbf16, #tpu.memory_space<vmem>>, vector<128x128xbf16>
    %cst_31 = arith.constant dense<0.000000e+00> : vector<48x128xf32>
    %40 = tpu.matmul %38, %39, %cst_31 {dimension_numbers = #tpu.dot_dimension_numbers<[1], [0], [0], [1], [0, 0, 1, 1], [], []>} : vector<48x128xbf16>, vector<128x128xbf16>, vector<48x128xf32> -> vector<48x128xf32>
    %c0_32 = arith.constant 0 : index
    %c0_33 = arith.constant 0 : index
    %41 = vector.load %arg13[%c0_32, %c0_33] : memref<1x128xf32, #tpu.memory_space<vmem>>, vector<1x128xf32>
    %42 = vector.broadcast %41 : vector<1x128xf32> to vector<48x128xf32>
    %43 = arith.addf %40, %42 : vector<48x128xf32>
    %cst_34 = arith.constant 0.000000e+00 : f32
    %44 = vector.broadcast %cst_34 : f32 to vector<48x128xf32>
    %45 = arith.subf %44, %43 : vector<48x128xf32>
    %46 = math.exp %45 : vector<48x128xf32>
    %cst_35 = arith.constant 1.000000e+00 : f32
    %47 = vector.broadcast %cst_35 : f32 to vector<48x128xf32>
    %48 = arith.addf %47, %46 : vector<48x128xf32>
    %49 = tpu.reciprocal %48 {approx = true} : vector<48x128xf32> -> vector<48x128xf32>
    %c0_36 = arith.constant 0 : index
    %c0_37 = arith.constant 0 : index
    %50 = vector.load %arg14[%c0_36, %c0_37] : memref<48x128xf32, #tpu.memory_space<vmem>>, vector<48x128xf32>
    tpu.vector_store %arg14[%c0_36, %c0_37], %49 {strides = array<i32>} : memref<48x128xf32, #tpu.memory_space<vmem>>, vector<48x128xf32>,
    return
  }
  func.func @transform_0(%arg0: i32) -> (i32, i32) {
    %c0_i32 = arith.constant 0 : i32
    %c0_i32_0 = arith.constant 0 : i32
    return %arg0, %c0_i32 : i32, i32
  }
  func.func @transform_1(%arg0: i32) -> (i32, i32) {
    %c0_i32 = arith.constant 0 : i32
    %c0_i32_0 = arith.constant 0 : i32
    return %arg0, %c0_i32 : i32, i32
  }
  func.func @transform_2(%arg0: i32) -> (i32, i32) {
    %c0_i32 = arith.constant 0 : i32
    %c0_i32_0 = arith.constant 0 : i32
    %c0_i32_1 = arith.constant 0 : i32
    return %c0_i32, %c0_i32_0 : i32, i32
  }
  func.func @transform_3(%arg0: i32) -> (i32, i32) {
    %c0_i32 = arith.constant 0 : i32
    %c0_i32_0 = arith.constant 0 : i32
    %c0_i32_1 = arith.constant 0 : i32
    return %c0_i32, %c0_i32_0 : i32, i32
  }
  func.func @transform_4(%arg0: i32) -> (i32, i32) {
    %c0_i32 = arith.constant 0 : i32
    %c0_i32_0 = arith.constant 0 : i32
    %c0_i32_1 = arith.constant 0 : i32
    return %c0_i32, %c0_i32_0 : i32, i32
  }
  func.func @transform_5(%arg0: i32) -> (i32, i32) {
    %c0_i32 = arith.constant 0 : i32
    %c0_i32_0 = arith.constant 0 : i32
    %c0_i32_1 = arith.constant 0 : i32
    return %c0_i32, %c0_i32_0 : i32, i32
  }
  func.func @transform_6(%arg0: i32) -> (i32, i32) {
    %c0_i32 = arith.constant 0 : i32
    %c0_i32_0 = arith.constant 0 : i32
    %c0_i32_1 = arith.constant 0 : i32
    return %c0_i32, %c0_i32_0 : i32, i32
  }
  func.func @transform_7(%arg0: i32) -> (i32, i32) {
    %c0_i32 = arith.constant 0 : i32
    %c0_i32_0 = arith.constant 0 : i32
    %c0_i32_1 = arith.constant 0 : i32
    return %c0_i32, %c0_i32_0 : i32, i32
  }
  func.func @transform_8(%arg0: i32) -> (i32, i32) {
    %c0_i32 = arith.constant 0 : i32
    %c0_i32_0 = arith.constant 0 : i32
    %c0_i32_1 = arith.constant 0 : i32
    return %c0_i32, %c0_i32_0 : i32, i32
  }
  func.func @transform_9(%arg0: i32) -> (i32, i32) {
    %c0_i32 = arith.constant 0 : i32
    %c0_i32_0 = arith.constant 0 : i32
    %c0_i32_1 = arith.constant 0 : i32
    return %c0_i32, %c0_i32_0 : i32, i32
  }
  func.func @transform_10(%arg0: i32) -> (i32, i32) {
    %c0_i32 = arith.constant 0 : i32
    %c0_i32_0 = arith.constant 0 : i32
    %c0_i32_1 = arith.constant 0 : i32
    return %c0_i32, %c0_i32_0 : i32, i32
  }
  func.func @transform_11(%arg0: i32) -> (i32, i32) {
    %c0_i32 = arith.constant 0 : i32
    %c0_i32_0 = arith.constant 0 : i32
    %c0_i32_1 = arith.constant 0 : i32
    return %c0_i32, %c0_i32_0 : i32, i32
  }
  func.func @transform_12(%arg0: i32) -> (i32, i32) {
    %c0_i32 = arith.constant 0 : i32
    %c0_i32_0 = arith.constant 0 : i32
    %c0_i32_1 = arith.constant 0 : i32
    return %c0_i32, %c0_i32_0 : i32, i32
  }
  func.func @transform_13(%arg0: i32) -> (i32, i32) {
    %c0_i32 = arith.constant 0 : i32
    %c0_i32_0 = arith.constant 0 : i32
    return %arg0, %c0_i32 : i32, i32
  }
}

</mosaic_0001>

<llo_original>
// kernel: tpu_custom_call.1
$region0: #{tpu_custom_call.1}
  #allocation0 [shape = 'u32[]', space=smem, size = 0x4, offset = 0x4, fixed_abs, tag = 'smem constant byte address 0x4 - core index']
  #allocation1 [shape = 'u32[144,128]{1,0:T(1,128)}', space=vmem, size = 0x12000, scoped, tag = 'internal scratch']
  %s0 = inlined_call_operand.vmem [shape: f32[48,16], index: 0, kind: input, shape index: {}]
  %s1 = inlined_call_operand.vmem [shape: f32[48,16], index: 1, kind: input, shape index: {}]
  %s2 = inlined_call_operand.hbm [shape: bf16[16,512], index: 2, kind: input, shape index: {}]
  %s3 = inlined_call_operand.hbm [shape: bf16[16,512], index: 3, kind: input, shape index: {}]
  %s4 = inlined_call_operand.vmem [shape: f32[1,512], index: 4, kind: input, shape index: {}]
  %s5 = inlined_call_operand.hbm [shape: bf16[512,256], index: 5, kind: input, shape index: {}]
  %s6 = inlined_call_operand.vmem [shape: f32[1,256], index: 6, kind: input, shape index: {}]
  %s7 = inlined_call_operand.vmem [shape: bf16[256,128], index: 7, kind: input, shape index: {}]
  %s8 = inlined_call_operand.vmem [shape: f32[1,128], index: 8, kind: input, shape index: {}]
  %s9 = inlined_call_operand.hbm [shape: bf16[128,128], index: 9, kind: input, shape index: {}]
  %s10 = inlined_call_operand.vmem [shape: f32[1,128], index: 10, kind: input, shape index: {}]
  %s11 = inlined_call_operand.hbm [shape: bf16[128,128], index: 11, kind: input, shape index: {}]
  %s12 = inlined_call_operand.vmem [shape: f32[1,128], index: 12, kind: input, shape index: {}]
  %s13 = inlined_call_operand.hbm [shape: f32[48,128], index: 13, kind: output, shape index: {}]
  %s14 = sld [smem:[#allocation0]]
  $region82: #{tpu_custom_call.1} parent=0
    _
  %s16 = ssub.s32 1, %s14
  %s17 = scalar_select 0, %s16, %s14
  $region1: #{tpu_custom_call.1} parent=0
    #allocation2 [shape = 'u8[16384]{0}', space=vmem, size = 0x4000, scoped, tag = 'input window, operand 2, single buffered']
    #allocation3 [shape = 's32[1]{0}', space=sflag, size = 0x4, scoped, tag = 'scoped memory for tpu_custom_call.1']
    #allocation4 [shape = 's32[1]{0}', space=sflag, size = 0x4, scoped, tag = 'scoped memory for tpu_custom_call.1']
    #allocation5 [shape = 'u8[16384]{0}', space=vmem, size = 0x4000, scoped, tag = 'input window, operand 3, single buffered']
    #allocation6 [shape = 's32[1]{0}', space=sflag, size = 0x4, scoped, tag = 'scoped memory for tpu_custom_call.1']
    #allocation7 [shape = 'u8[262144]{0}', space=vmem, size = 0x40000, scoped, tag = 'input window, operand 5, single buffered']
    #allocation8 [shape = 'u8[32768]{0}', space=vmem, size = 0x8000, scoped, tag = 'input window, operand 9, single buffered']
    #allocation9 [shape = 's32[1]{0}', space=sflag, size = 0x4, scoped, tag = 'scoped memory for tpu_custom_call.1']
    #allocation10 [shape = 'u8[32768]{0}', space=vmem, size = 0x8000, scoped, tag = 'input window, operand 11, single buffered']
    #allocation11 [shape = 'u8[24576]{0}', space=vmem, size = 0x6000, scoped, tag = 'output window, operand 0, single buffered']
    %18 = vsyncpa [#allocation3], 0
    %19 = vsyncpa [#allocation6], 0
    %20 = vsyncpa [#allocation9], 0
    %21 = vsyncpa [#allocation4], 0
    // Predicated region
    $region2: #{tpu_custom_call.1} parent=1 // pred_check
      _
    $region3: #{tpu_custom_call.1} parent=1 // pred_check_branch
      %23 = sbr.rel (0) target = $region5
    $region4: #{tpu_custom_call.1} parent=1 // pred_region
      _
    $region5: #{tpu_custom_call.1} parent=1 // pred_fallthru
      _
    // Predicated region
    $region6: #{tpu_custom_call.1} parent=1 // pred_check
      _
    $region7: #{tpu_custom_call.1} parent=1 // pred_check_branch
      %25 = sbr.rel (0) target = $region9
    $region8: #{tpu_custom_call.1} parent=1 // pred_region
      _
    $region9: #{tpu_custom_call.1} parent=1 // pred_fallthru
      _
    // Predicated region
    $region10: #{tpu_custom_call.1} parent=1 // pred_check
      _
    $region11: #{tpu_custom_call.1} parent=1 // pred_check_branch
      %27 = sbr.rel (0) target = $region13
    $region12: #{tpu_custom_call.1} parent=1 // pred_region
      %s29 = ssub.s32 512, 512
      %30 = vsyncadd [#allocation3], %s29
      %s31 = sshll.u32 [#allocation2], 4
      %s32 = int_to_ptr.vmem [resolvable:$true] %s31
      %37 = dma.hbm_to_vmem [thread:$0]  %s2, 512, %s32, [#allocation3], 256, 256, 16
    $region13: #{tpu_custom_call.1} parent=1 // pred_fallthru
      _
    // Predicated region
    $region14: #{tpu_custom_call.1} parent=1 // pred_check
      _
    $region15: #{tpu_custom_call.1} parent=1 // pred_check_branch
      %39 = sbr.rel (0) target = $region17
    $region16: #{tpu_custom_call.1} parent=1 // pred_region
      %s41 = ssub.s32 512, 512
      %42 = vsyncadd [#allocation6], %s41
      %s43 = sshll.u32 [#allocation5], 4
      %s44 = int_to_ptr.vmem [resolvable:$true] %s43
      %49 = dma.hbm_to_vmem [thread:$0]  %s3, 512, %s44, [#allocation6], 256, 256, 16
    $region17: #{tpu_custom_call.1} parent=1 // pred_fallthru
      _
    // Predicated region
    $region18: #{tpu_custom_call.1} parent=1 // pred_check
      _
    $region19: #{tpu_custom_call.1} parent=1 // pred_check_branch
      %51 = sbr.rel (0) target = $region21
    $region20: #{tpu_custom_call.1} parent=1 // pred_region
      _
    $region21: #{tpu_custom_call.1} parent=1 // pred_fallthru
      _
    // Predicated region
    $region22: #{tpu_custom_call.1} parent=1 // pred_check
      _
    $region23: #{tpu_custom_call.1} parent=1 // pred_check_branch
      %53 = sbr.rel (0) target = $region25
    $region24: #{tpu_custom_call.1} parent=1 // pred_region
      %s55 = ssub.s32 8192, 8192
      %56 = vsyncadd [#allocation6], %s55
      %s57 = sshll.u32 [#allocation7], 4
      %s58 = int_to_ptr.vmem [resolvable:$true] %s57
      %63 = dma.hbm_to_vmem [thread:$0]  %s5, 8192, %s58, [#allocation6], 128, 128, 8
    $region25: #{tpu_custom_call.1} parent=1 // pred_fallthru
      _
    // Predicated region
    $region26: #{tpu_custom_call.1} parent=1 // pred_check
      _
    $region27: #{tpu_custom_call.1} parent=1 // pred_check_branch
      %65 = sbr.rel (0) target = $region29
    $region28: #{tpu_custom_call.1} parent=1 // pred_region
      _
    $region29: #{tpu_custom_call.1} parent=1 // pred_fallthru
      _
    // Predicated region
    $region30: #{tpu_custom_call.1} parent=1 // pred_check
      _
    $region31: #{tpu_custom_call.1} parent=1 // pred_check_branch
      %67 = sbr.rel (0) target = $region33
    $region32: #{tpu_custom_call.1} parent=1 // pred_region
      _
    $region33: #{tpu_custom_call.1} parent=1 // pred_fallthru
      _
    // Predicated region
    $region34: #{tpu_custom_call.1} parent=1 // pred_check
      _
    $region35: #{tpu_custom_call.1} parent=1 // pred_check_branch
      %69 = sbr.rel (0) target = $region37
    $region36: #{tpu_custom_call.1} parent=1 // pred_region
      _
    $region37: #{tpu_custom_call.1} parent=1 // pred_fallthru
      _
    // Predicated region
    $region38: #{tpu_custom_call.1} parent=1 // pred_check
      _
    $region39: #{tpu_custom_call.1} parent=1 // pred_check_branch
      %71 = sbr.rel (0) target = $region41
    $region40: #{tpu_custom_call.1} parent=1 // pred_region
      %s73 = ssub.s32 1024, 1024
      %74 = vsyncadd [#allocation9], %s73
      %s75 = sshll.u32 [#allocation8], 4
      %s76 = int_to_ptr.vmem [resolvable:$true] %s75
      %81 = dma.hbm_to_vmem [thread:$0]  %s9, 1024, %s76, [#allocation9], 64, 64, 4
    $region41: #{tpu_custom_call.1} parent=1 // pred_fallthru
      _
    // Predicated region
    $region42: #{tpu_custom_call.1} parent=1 // pred_check
      _
    $region43: #{tpu_custom_call.1} parent=1 // pred_check_branch
      %83 = sbr.rel (0) target = $region45
    $region44: #{tpu_custom_call.1} parent=1 // pred_region
      _
    $region45: #{tpu_custom_call.1} parent=1 // pred_fallthru
      _
    // Predicated region
    $region46: #{tpu_custom_call.1} parent=1 // pred_check
      _
    $region47: #{tpu_custom_call.1} parent=1 // pred_check_branch
      %85 = sbr.rel (0) target = $region49
    $region48: #{tpu_custom_call.1} parent=1 // pred_region
      %s87 = ssub.s32 1024, 1024
      %88 = vsyncadd [#allocation9], %s87
      %s89 = sshll.u32 [#allocation10], 4
      %s90 = int_to_ptr.vmem [resolvable:$true] %s89
      %95 = dma.hbm_to_vmem [thread:$0]  %s11, 1024, %s90, [#allocation9], 64, 64, 4
    $region49: #{tpu_custom_call.1} parent=1 // pred_fallthru
      _
    // Predicated region
    $region50: #{tpu_custom_call.1} parent=1 // pred_check
      _
    $region51: #{tpu_custom_call.1} parent=1 // pred_check_branch
      %97 = sbr.rel (0) target = $region53
    $region52: #{tpu_custom_call.1} parent=1 // pred_region
      _
    $region53: #{tpu_custom_call.1} parent=1 // pred_fallthru
      _
    // Predicated region
    $region54: #{tpu_custom_call.1} parent=1 // pred_check
      _
    $region55: #{tpu_custom_call.1} parent=1 // pred_check_branch
      %99 = sbr.rel (0) target = $region57
    $region56: #{tpu_custom_call.1} parent=1 // pred_region
      %100 = dma.done [#allocation3], 512
    $region57: #{tpu_custom_call.1} parent=1 // pred_fallthru
      _
    // Predicated region
    $region58: #{tpu_custom_call.1} parent=1 // pred_check
      _
    $region59: #{tpu_custom_call.1} parent=1 // pred_check_branch
      %102 = sbr.rel (0) target = $region61
    $region60: #{tpu_custom_call.1} parent=1 // pred_region
      %103 = dma.done [#allocation6], 512
    $region61: #{tpu_custom_call.1} parent=1 // pred_fallthru
      _
    // Predicated region
    $region62: #{tpu_custom_call.1} parent=1 // pred_check
      _
    $region63: #{tpu_custom_call.1} parent=1 // pred_check_branch
      %105 = sbr.rel (0) target = $region65
    $region64: #{tpu_custom_call.1} parent=1 // pred_region
      %106 = dma.done [#allocation6], 8192
    $region65: #{tpu_custom_call.1} parent=1 // pred_fallthru
      _
    // Predicated region
    $region66: #{tpu_custom_call.1} parent=1 // pred_check
      _
    $region67: #{tpu_custom_call.1} parent=1 // pred_check_branch
      %108 = sbr.rel (0) target = $region69
    $region68: #{tpu_custom_call.1} parent=1 // pred_region
      %109 = dma.done [#allocation9], 1024
    $region69: #{tpu_custom_call.1} parent=1 // pred_fallthru
      _
    // Predicated region
    $region70: #{tpu_custom_call.1} parent=1 // pred_check
      _
    $region71: #{tpu_custom_call.1} parent=1 // pred_check_branch
      %111 = sbr.rel (0) target = $region73
    $region72: #{tpu_custom_call.1} parent=1 // pred_region
      %112 = dma.done [#allocation9], 1024
    $region73: #{tpu_custom_call.1} parent=1 // pred_fallthru
      _
    %v114 = vld [vmem:[%s0] sm:$0xff]
    %v115 = vld [vmem:[%s0 + $0x8] sm:$0xff]
    %v116 = vld [vmem:[%s0 + $0x10] sm:$0xff]
    %v117 = vld [vmem:[%s0 + $0x18] sm:$0xff]
    %v118 = vld [vmem:[%s0 + $0x20] sm:$0xff]
    %v119 = vld [vmem:[%s0 + $0x28] sm:$0xff]
    %v120 = vpack.c.bf16 %v115, %v114
    %v121 = vpack.c.bf16 %v117, %v116
    %v122 = vpack.c.bf16 %v119, %v118
    %v123 = vld [vmem:[#allocation2] sm:$0xff]
    %v124 = vld [vmem:[#allocation2 + $0x8] sm:$0xff]
    %v125 = vld [vmem:[#allocation2 + $0x10] sm:$0xff]
    %v126 = vld [vmem:[#allocation2 + $0x18] sm:$0xff]
    %v127 = vld [vmem:[%s1] sm:$0xff]
    %v128 = vld [vmem:[%s1 + $0x8] sm:$0xff]
    %v129 = vld [vmem:[%s1 + $0x10] sm:$0xff]
    %v130 = vld [vmem:[%s1 + $0x18] sm:$0xff]
    %v131 = vld [vmem:[%s1 + $0x20] sm:$0xff]
    %v132 = vld [vmem:[%s1 + $0x28] sm:$0xff]
    %v133 = vpack.c.bf16 %v128, %v127
    %v134 = vpack.c.bf16 %v130, %v129
    %v135 = vpack.c.bf16 %v132, %v131
    %v136 = vld [vmem:[#allocation5] sm:$0xff]
    %v137 = vld [vmem:[#allocation5 + $0x8] sm:$0xff]
    %v138 = vld [vmem:[#allocation5 + $0x10] sm:$0xff]
    %v139 = vld [vmem:[#allocation5 + $0x18] sm:$0xff]
    %v144 = vunpack.c.l.b16 %v136
    %v145 = vunpack.c.h.b16 %v136
    %v146 = vunpack.c.l.b16 %v137
    %v147 = vunpack.c.h.b16 %v137
    %v148 = vunpack.c.l.b16 %v138
    %v149 = vunpack.c.h.b16 %v138
    %v150 = vunpack.c.l.b16 %v139
    %v151 = vunpack.c.h.b16 %v139
    %v152 = vpack.c.b16 %v148, %v144
    %v153 = vpack.c.b16 %v149, %v145
    %v154 = vpack.c.b16 %v150, %v146
    %v155 = vpack.c.b16 %v151, %v147
    %vm160 = vcmask 130048
    %v162 = vsel %vm160, %v133, 0
    %v165 = vsel %vm160, %v134, 0
    %v168 = vsel %vm160, %v135, 0
    %170 = vmatprep.subr.bf16.mxu0 %v153
    %171 = vmatpush1.bf16.msra.mxu0 %v152
    %172 = vmatprep.subr.bf16.mxu0 0
    %173 = vmatpush1.bf16.msra.mxu0 0
    %174 = vmatprep.subr.bf16.mxu0 0
    %175 = vmatpush1.bf16.msra.mxu0 0
    %176 = vmatprep.subr.bf16.mxu0 0
    %177 = vmatpush1.bf16.msra.mxu0 0
    %178 = vmatprep.subr.bf16.mxu0 0
    %179 = vmatpush1.bf16.msra.mxu0 0
    %180 = vmatprep.subr.bf16.mxu0 0
    %181 = vmatpush1.bf16.msra.mxu0 0
    %182 = vmatprep.subr.bf16.mxu0 0
    %183 = vmatpush1.bf16.msra.mxu0 0
    %184 = vmatprep.subr.bf16.mxu0 0
    %185 = vmatpush1.bf16.msra.mxu0 0
    %186 = vmatprep.subr.bf16.mxu0 0
    %187 = vmatpush1.bf16.msra.mxu0 0
    %188 = vmatprep.subr.bf16.mxu0 0
    %189 = vmatpush1.bf16.msra.mxu0 0
    %190 = vmatprep.subr.bf16.mxu0 0
    %191 = vmatpush1.bf16.msra.mxu0 0
    %192 = vmatprep.subr.bf16.mxu0 0
    %193 = vmatpush1.bf16.msra.mxu0 0
    %194 = vmatprep.subr.bf16.mxu0 0
    %195 = vmatpush1.bf16.msra.mxu0 0
    %196 = vmatprep.subr.bf16.mxu0 0
    %197 = vmatpush1.bf16.msra.mxu0 0
    %198 = vmatprep.subr.bf16.mxu0 0
    %199 = vmatpush1.bf16.msra.mxu0 0
    %200 = vmatprep.subr.bf16.mxu0 0
    %201 = vmatpush1.bf16.msra.mxu0 0
    %202 = vmatprep.mubr.bf16.mxu0 0
    %203 = vmatmul.mubr.bf16.gmra.mrb[0].mxu0 %v162
    %v204 = vpop.f32.mrb[0].mxu0
    %v205 = vadd.f32 0.0, %v204
    %v206 = vpop.f32.mrb[0].mxu0
    %v207 = vadd.f32 0.0, %v206
    %v208 = vpop.f32.mrb[0].mxu0
    %v209 = vadd.f32 0.0, %v208
    %v210 = vpop.f32.mrb[0].mxu0
    %v211 = vadd.f32 0.0, %v210
    %212 = vmatprep.mubr.bf16.mxu0 0
    %213 = vmatmul.mubr.bf16.gmra.mrb[0].mxu0 %v165
    %v214 = vpop.f32.mrb[0].mxu0
    %v215 = vadd.f32 0.0, %v214
    %v216 = vpop.f32.mrb[0].mxu0
    %v217 = vadd.f32 0.0, %v216
    %v218 = vpop.f32.mrb[0].mxu0
    %v219 = vadd.f32 0.0, %v218
    %v220 = vpop.f32.mrb[0].mxu0
    %v221 = vadd.f32 0.0, %v220
    %222 = vmatprep.mubr.bf16.mxu0 0
    %223 = vmatmul.mubr.bf16.gmra.mrb[0].mxu0 %v168
    %v224 = vpop.f32.mrb[0].mxu0
    %v225 = vadd.f32 0.0, %v224
    %v226 = vpop.f32.mrb[0].mxu0
    %v227 = vadd.f32 0.0, %v226
    %v228 = vpop.f32.mrb[0].mxu0
    %v229 = vadd.f32 0.0, %v228
    %v230 = vpop.f32.mrb[0].mxu0
    %v231 = vadd.f32 0.0, %v230
    %232 = vdwg.mxu0
    %233 = vmatprep.subr.bf16.mxu0 %v155
    %234 = vmatpush1.bf16.msra.mxu0 %v154
    %235 = vmatprep.subr.bf16.mxu0 0
    %236 = vmatpush1.bf16.msra.mxu0 0
    %237 = vmatprep.subr.bf16.mxu0 0
    %238 = vmatpush1.bf16.msra.mxu0 0
    %239 = vmatprep.subr.bf16.mxu0 0
    %240 = vmatpush1.bf16.msra.mxu0 0
    %241 = vmatprep.subr.bf16.mxu0 0
    %242 = vmatpush1.bf16.msra.mxu0 0
    %243 = vmatprep.subr.bf16.mxu0 0
    %244 = vmatpush1.bf16.msra.mxu0 0
    %245 = vmatprep.subr.bf16.mxu0 0
    %246 = vmatpush1.bf16.msra.mxu0 0
    %247 = vmatprep.subr.bf16.mxu0 0
    %248 = vmatpush1.bf16.msra.mxu0 0
    %249 = vmatprep.subr.bf16.mxu0 0
    %250 = vmatpush1.bf16.msra.mxu0 0
    %251 = vmatprep.subr.bf16.mxu0 0
    %252 = vmatpush1.bf16.msra.mxu0 0
    %253 = vmatprep.subr.bf16.mxu0 0
    %254 = vmatpush1.bf16.msra.mxu0 0
    %255 = vmatprep.subr.bf16.mxu0 0
    %256 = vmatpush1.bf16.msra.mxu0 0
    %257 = vmatprep.subr.bf16.mxu0 0
    %258 = vmatpush1.bf16.msra.mxu0 0
    %259 = vmatprep.subr.bf16.mxu0 0
    %260 = vmatpush1.bf16.msra.mxu0 0
    %261 = vmatprep.subr.bf16.mxu0 0
    %262 = vmatpush1.bf16.msra.mxu0 0
    %263 = vmatprep.subr.bf16.mxu0 0
    %264 = vmatpush1.bf16.msra.mxu0 0
    %265 = vmatprep.mubr.bf16.mxu0 0
    %266 = vmatmul.mubr.bf16.gmra.mrb[0].mxu0 %v162
    %v267 = vpop.f32.mrb[0].mxu0
    %v268 = vadd.f32 0.0, %v267
    %v269 = vpop.f32.mrb[0].mxu0
    %v270 = vadd.f32 0.0, %v269
    %v271 = vpop.f32.mrb[0].mxu0
    %v272 = vadd.f32 0.0, %v271
    %v273 = vpop.f32.mrb[0].mxu0
    %v274 = vadd.f32 0.0, %v273
    %275 = vmatprep.mubr.bf16.mxu0 0
    %276 = vmatmul.mubr.bf16.gmra.mrb[0].mxu0 %v165
    %v277 = vpop.f32.mrb[0].mxu0
    %v278 = vadd.f32 0.0, %v277
    %v279 = vpop.f32.mrb[0].mxu0
    %v280 = vadd.f32 0.0, %v279
    %v281 = vpop.f32.mrb[0].mxu0
    %v282 = vadd.f32 0.0, %v281
    %v283 = vpop.f32.mrb[0].mxu0
    %v284 = vadd.f32 0.0, %v283
    %285 = vmatprep.mubr.bf16.mxu0 0
    %286 = vmatmul.mubr.bf16.gmra.mrb[0].mxu0 %v168
    %v287 = vpop.f32.mrb[0].mxu0
    %v288 = vadd.f32 0.0, %v287
    %v289 = vpop.f32.mrb[0].mxu0
    %v290 = vadd.f32 0.0, %v289
    %v291 = vpop.f32.mrb[0].mxu0
    %v292 = vadd.f32 0.0, %v291
    %v293 = vpop.f32.mrb[0].mxu0
    %v294 = vadd.f32 0.0, %v293
    %295 = vdwg.mxu0
    %v300 = vunpack.c.l.b16 %v123
    %v301 = vunpack.c.h.b16 %v123
    %v302 = vunpack.c.l.b16 %v124
    %v303 = vunpack.c.h.b16 %v124
    %v304 = vunpack.c.l.b16 %v125
    %v305 = vunpack.c.h.b16 %v125
    %v306 = vunpack.c.l.b16 %v126
    %v307 = vunpack.c.h.b16 %v126
    %v308 = vpack.c.b16 %v304, %v300
    %v309 = vpack.c.b16 %v305, %v301
    %v310 = vpack.c.b16 %v306, %v302
    %v311 = vpack.c.b16 %v307, %v303
    %v317 = vsel %vm160, %v120, 0
    %v320 = vsel %vm160, %v121, 0
    %v323 = vsel %vm160, %v122, 0
    %325 = vmatprep.subr.bf16.mxu0 %v309
    %326 = vmatpush1.bf16.msra.mxu0 %v308
    %327 = vmatprep.subr.bf16.mxu0 0
    %328 = vmatpush1.bf16.msra.mxu0 0
    %329 = vmatprep.subr.bf16.mxu0 0
    %330 = vmatpush1.bf16.msra.mxu0 0
    %331 = vmatprep.subr.bf16.mxu0 0
    %332 = vmatpush1.bf16.msra.mxu0 0
    %333 = vmatprep.subr.bf16.mxu0 0
    %334 = vmatpush1.bf16.msra.mxu0 0
    %335 = vmatprep.subr.bf16.mxu0 0
    %336 = vmatpush1.bf16.msra.mxu0 0
    %337 = vmatprep.subr.bf16.mxu0 0
    %338 = vmatpush1.bf16.msra.mxu0 0
    %339 = vmatprep.subr.bf16.mxu0 0
    %340 = vmatpush1.bf16.msra.mxu0 0
    %341 = vmatprep.subr.bf16.mxu0 0
    %342 = vmatpush1.bf16.msra.mxu0 0
    %343 = vmatprep.subr.bf16.mxu0 0
    %344 = vmatpush1.bf16.msra.mxu0 0
    %345 = vmatprep.subr.bf16.mxu0 0
    %346 = vmatpush1.bf16.msra.mxu0 0
    %347 = vmatprep.subr.bf16.mxu0 0
    %348 = vmatpush1.bf16.msra.mxu0 0
    %349 = vmatprep.subr.bf16.mxu0 0
    %350 = vmatpush1.bf16.msra.mxu0 0
    %351 = vmatprep.subr.bf16.mxu0 0
    %352 = vmatpush1.bf16.msra.mxu0 0
    %353 = vmatprep.subr.bf16.mxu0 0
    %354 = vmatpush1.bf16.msra.mxu0 0
    %355 = vmatprep.subr.bf16.mxu0 0
    %356 = vmatpush1.bf16.msra.mxu0 0
    %357 = vmatprep.mubr.bf16.mxu0 0
    %358 = vmatmul.mubr.bf16.gmra.mrb[0].mxu0 %v317
    %v359 = vpop.f32.mrb[0].mxu0
    %v360 = vadd.f32 %v205, %v359
    %v361 = vpop.f32.mrb[0].mxu0
    %v362 = vadd.f32 %v207, %v361
    %v363 = vpop.f32.mrb[0].mxu0
    %v364 = vadd.f32 %v209, %v363
    %v365 = vpop.f32.mrb[0].mxu0
    %v366 = vadd.f32 %v211, %v365
    %367 = vmatprep.mubr.bf16.mxu0 0
    %368 = vmatmul.mubr.bf16.gmra.mrb[0].mxu0 %v320
    %v369 = vpop.f32.mrb[0].mxu0
    %v370 = vadd.f32 %v215, %v369
    %v371 = vpop.f32.mrb[0].mxu0
    %v372 = vadd.f32 %v217, %v371
    %v373 = vpop.f32.mrb[0].mxu0
    %v374 = vadd.f32 %v219, %v373
    %v375 = vpop.f32.mrb[0].mxu0
    %v376 = vadd.f32 %v221, %v375
    %377 = vmatprep.mubr.bf16.mxu0 0
    %378 = vmatmul.mubr.bf16.gmra.mrb[0].mxu0 %v323
    %v379 = vpop.f32.mrb[0].mxu0
    %v380 = vadd.f32 %v225, %v379
    %v381 = vpop.f32.mrb[0].mxu0
    %v382 = vadd.f32 %v227, %v381
    %v383 = vpop.f32.mrb[0].mxu0
    %v384 = vadd.f32 %v229, %v383
    %v385 = vpop.f32.mrb[0].mxu0
    %v386 = vadd.f32 %v231, %v385
    %387 = vdwg.mxu0
    %388 = vmatprep.subr.bf16.mxu0 %v311
    %389 = vmatpush1.bf16.msra.mxu0 %v310
    %390 = vmatprep.subr.bf16.mxu0 0
    %391 = vmatpush1.bf16.msra.mxu0 0
    %392 = vmatprep.subr.bf16.mxu0 0
    %393 = vmatpush1.bf16.msra.mxu0 0
    %394 = vmatprep.subr.bf16.mxu0 0
    %395 = vmatpush1.bf16.msra.mxu0 0
    %396 = vmatprep.subr.bf16.mxu0 0
    %397 = vmatpush1.bf16.msra.mxu0 0
    %398 = vmatprep.subr.bf16.mxu0 0
    %399 = vmatpush1.bf16.msra.mxu0 0
    %400 = vmatprep.subr.bf16.mxu0 0
    %401 = vmatpush1.bf16.msra.mxu0 0
    %402 = vmatprep.subr.bf16.mxu0 0
    %403 = vmatpush1.bf16.msra.mxu0 0
    %404 = vmatprep.subr.bf16.mxu0 0
    %405 = vmatpush1.bf16.msra.mxu0 0
    %406 = vmatprep.subr.bf16.mxu0 0
    %407 = vmatpush1.bf16.msra.mxu0 0
    %408 = vmatprep.subr.bf16.mxu0 0
    %409 = vmatpush1.bf16.msra.mxu0 0
    %410 = vmatprep.subr.bf16.mxu0 0
    %411 = vmatpush1.bf16.msra.mxu0 0
    %412 = vmatprep.subr.bf16.mxu0 0
    %413 = vmatpush1.bf16.msra.mxu0 0
    %414 = vmatprep.subr.bf16.mxu0 0
    %415 = vmatpush1.bf16.msra.mxu0 0
    %416 = vmatprep.subr.bf16.mxu0 0
    %417 = vmatpush1.bf16.msra.mxu0 0
    %418 = vmatprep.subr.bf16.mxu0 0
    %419 = vmatpush1.bf16.msra.mxu0 0
    %420 = vmatprep.mubr.bf16.mxu0 0
    %421 = vmatmul.mubr.bf16.gmra.mrb[0].mxu0 %v317
    %v422 = vpop.f32.mrb[0].mxu0
    %v423 = vadd.f32 %v268, %v422
    %v424 = vpop.f32.mrb[0].mxu0
    %v425 = vadd.f32 %v270, %v424
    %v426 = vpop.f32.mrb[0].mxu0
    %v427 = vadd.f32 %v272, %v426
    %v428 = vpop.f32.mrb[0].mxu0
    %v429 = vadd.f32 %v274, %v428
    %430 = vmatprep.mubr.bf16.mxu0 0
    %431 = vmatmul.mubr.bf16.gmra.mrb[0].mxu0 %v320
    %v432 = vpop.f32.mrb[0].mxu0
    %v433 = vadd.f32 %v278, %v432
    %v434 = vpop.f32.mrb[0].mxu0
    %v435 = vadd.f32 %v280, %v434
    %v436 = vpop.f32.mrb[0].mxu0
    %v437 = vadd.f32 %v282, %v436
    %v438 = vpop.f32.mrb[0].mxu0
    %v439 = vadd.f32 %v284, %v438
    %440 = vmatprep.mubr.bf16.mxu0 0
    %441 = vmatmul.mubr.bf16.gmra.mrb[0].mxu0 %v323
    %v442 = vpop.f32.mrb[0].mxu0
    %v443 = vadd.f32 %v288, %v442
    %v444 = vpop.f32.mrb[0].mxu0
    %v445 = vadd.f32 %v290, %v444
    %v446 = vpop.f32.mrb[0].mxu0
    %v447 = vadd.f32 %v292, %v446
    %v448 = vpop.f32.mrb[0].mxu0
    %v449 = vadd.f32 %v294, %v448
    %450 = vdwg.mxu0
    %v451 = vld [vmem:[%s4] sm:$0xf]
    %v453 = vlaneseq
    %v454 = vshrl.u32 %v453, 7
    %v455 = vsub.s32 0, %v454
    %v456 = vrot.slane %v451, %v455
    %v457 = vlaneseq
    %v458 = vshrl.u32 %v457, 7
    %v459 = vsub.s32 1, %v458
    %v460 = vrot.slane %v451, %v459
    %v461 = vlaneseq
    %v462 = vshrl.u32 %v461, 7
    %v463 = vsub.s32 2, %v462
    %v464 = vrot.slane %v451, %v463
    %v465 = vlaneseq
    %v466 = vshrl.u32 %v465, 7
    %v467 = vsub.s32 3, %v466
    %v468 = vrot.slane %v451, %v467
    %v473 = vadd.f32 %v360, %v456
    %v474 = vadd.f32 %v362, %v460
    %v475 = vadd.f32 %v423, %v464
    %v476 = vadd.f32 %v425, %v468
    %v477 = vadd.f32 %v364, %v456
    %v478 = vadd.f32 %v366, %v460
    %v479 = vadd.f32 %v427, %v464
    %v480 = vadd.f32 %v429, %v468
    %v481 = vadd.f32 %v370, %v456
    %v482 = vadd.f32 %v372, %v460
    %v483 = vadd.f32 %v433, %v464
    %v484 = vadd.f32 %v435, %v468
    %v485 = vadd.f32 %v374, %v456
    %v486 = vadd.f32 %v376, %v460
    %v487 = vadd.f32 %v437, %v464
    %v488 = vadd.f32 %v439, %v468
    %v489 = vadd.f32 %v380, %v456
    %v490 = vadd.f32 %v382, %v460
    %v491 = vadd.f32 %v443, %v464
    %v492 = vadd.f32 %v445, %v468
    %v493 = vadd.f32 %v384, %v456
    %v494 = vadd.f32 %v386, %v460
    %v495 = vadd.f32 %v447, %v464
    %v496 = vadd.f32 %v449, %v468
    %v497 = vmax.f32 %v473, 0.0
    %v498 = vmax.f32 %v474, 0.0
    %v499 = vmax.f32 %v475, 0.0
    %v500 = vmax.f32 %v476, 0.0
    %v501 = vmax.f32 %v477, 0.0
    %v502 = vmax.f32 %v478, 0.0
    %v503 = vmax.f32 %v479, 0.0
    %v504 = vmax.f32 %v480, 0.0
    %v505 = vmax.f32 %v481, 0.0
    %v506 = vmax.f32 %v482, 0.0
    %v507 = vmax.f32 %v483, 0.0
    %v508 = vmax.f32 %v484, 0.0
    %v509 = vmax.f32 %v485, 0.0
    %v510 = vmax.f32 %v486, 0.0
    %v511 = vmax.f32 %v487, 0.0
    %v512 = vmax.f32 %v488, 0.0
    %v513 = vmax.f32 %v489, 0.0
    %v514 = vmax.f32 %v490, 0.0
    %v515 = vmax.f32 %v491, 0.0
    %v516 = vmax.f32 %v492, 0.0
    %v517 = vmax.f32 %v493, 0.0
    %v518 = vmax.f32 %v494, 0.0
    %v519 = vmax.f32 %v495, 0.0
    %v520 = vmax.f32 %v496, 0.0
    %v521 = vpack.c.bf16 %v501, %v497
    %v522 = vpack.c.bf16 %v502, %v498
    %v523 = vpack.c.bf16 %v503, %v499
    %v524 = vpack.c.bf16 %v504, %v500
    %v525 = vpack.c.bf16 %v509, %v505
    %v526 = vpack.c.bf16 %v510, %v506
    %v527 = vpack.c.bf16 %v511, %v507
    %v528 = vpack.c.bf16 %v512, %v508
    %v529 = vpack.c.bf16 %v517, %v513
    %v530 = vpack.c.bf16 %v518, %v514
    %v531 = vpack.c.bf16 %v519, %v515
    %v532 = vpack.c.bf16 %v520, %v516
    %v533 = vld [vmem:[#allocation7] sm:$0xff]
    %v534 = vld [vmem:[#allocation7 + $0x8] sm:$0xff]
    %v535 = vld [vmem:[#allocation7 + $0x10] sm:$0xff]
    %v536 = vld [vmem:[#allocation7 + $0x18] sm:$0xff]
    %v537 = vld [vmem:[#allocation7 + $0x20] sm:$0xff]
    %v538 = vld [vmem:[#allocation7 + $0x28] sm:$0xff]
    %v539 = vld [vmem:[#allocation7 + $0x30] sm:$0xff]
    %v540 = vld [vmem:[#allocation7 + $0x38] sm:$0xff]
    %v541 = vld [vmem:[#allocation7 + $0x40] sm:$0xff]
    %v542 = vld [vmem:[#allocation7 + $0x48] sm:$0xff]
    %v543 = vld [vmem:[#allocation7 + $0x50] sm:$0xff]
    %v544 = vld [vmem:[#allocation7 + $0x58] sm:$0xff]
    %v545 = vld [vmem:[#allocation7 + $0x60] sm:$0xff]
    %v546 = vld [vmem:[#allocation7 + $0x68] sm:$0xff]
    %v547 = vld [vmem:[#allocation7 + $0x70] sm:$0xff]
    %v548 = vld [vmem:[#allocation7 + $0x78] sm:$0xff]
    %v549 = vld [vmem:[#allocation7 + $0x80] sm:$0xff]
    %v550 = vld [vmem:[#allocation7 + $0x88] sm:$0xff]
    %v551 = vld [vmem:[#allocation7 + $0x90] sm:$0xff]
    %v552 = vld [vmem:[#allocation7 + $0x98] sm:$0xff]
    %v553 = vld [vmem:[#allocation7 + $0xa0] sm:$0xff]
    %v554 = vld [vmem:[#allocation7 + $0xa8] sm:$0xff]
    %v555 = vld [vmem:[#allocation7 + $0xb0] sm:$0xff]
    %v556 = vld [vmem:[#allocation7 + $0xb8] sm:$0xff]
    %v557 = vld [vmem:[#allocation7 + $0xc0] sm:$0xff]
    %v558 = vld [vmem:[#allocation7 + $0xc8] sm:$0xff]
    %v559 = vld [vmem:[#allocation7 + $0xd0] sm:$0xff]
    %v560 = vld [vmem:[#allocation7 + $0xd8] sm:$0xff]
    %v561 = vld [vmem:[#allocation7 + $0xe0] sm:$0xff]
    %v562 = vld [vmem:[#allocation7 + $0xe8] sm:$0xff]
    %v563 = vld [vmem:[#allocation7 + $0xf0] sm:$0xff]
    %v564 = vld [vmem:[#allocation7 + $0xf8] sm:$0xff]
    %v565 = vld [vmem:[#allocation7 + $0x100] sm:$0xff]
    %v566 = vld [vmem:[#allocation7 + $0x108] sm:$0xff]
    %v567 = vld [vmem:[#allocation7 + $0x110] sm:$0xff]
    %v568 = vld [vmem:[#allocation7 + $0x118] sm:$0xff]
    %v569 = vld [vmem:[#allocation7 + $0x120] sm:$0xff]
    %v570 = vld [vmem:[#allocation7 + $0x128] sm:$0xff]
    %v571 = vld [vmem:[#allocation7 + $0x130] sm:$0xff]
    %v572 = vld [vmem:[#allocation7 + $0x138] sm:$0xff]
    %v573 = vld [vmem:[#allocation7 + $0x140] sm:$0xff]
    %v574 = vld [vmem:[#allocation7 + $0x148] sm:$0xff]
    %v575 = vld [vmem:[#allocation7 + $0x150] sm:$0xff]
    %v576 = vld [vmem:[#allocation7 + $0x158] sm:$0xff]
    %v577 = vld [vmem:[#allocation7 + $0x160] sm:$0xff]
    %v578 = vld [vmem:[#allocation7 + $0x168] sm:$0xff]
    %v579 = vld [vmem:[#allocation7 + $0x170] sm:$0xff]
    %v580 = vld [vmem:[#allocation7 + $0x178] sm:$0xff]
    %v581 = vld [vmem:[#allocation7 + $0x180] sm:$0xff]
    %v582 = vld [vmem:[#allocation7 + $0x188] sm:$0xff]
    %v583 = vld [vmem:[#allocation7 + $0x190] sm:$0xff]
    %v584 = vld [vmem:[#allocation7 + $0x198] sm:$0xff]
    %v585 = vld [vmem:[#allocation7 + $0x1a0] sm:$0xff]
    %v586 = vld [vmem:[#allocation7 + $0x1a8] sm:$0xff]
    %v587 = vld [vmem:[#allocation7 + $0x1b0] sm:$0xff]
    %v588 = vld [vmem:[#allocation7 + $0x1b8] sm:$0xff]
    %v589 = vld [vmem:[#allocation7 + $0x1c0] sm:$0xff]
    %v590 = vld [vmem:[#allocation7 + $0x1c8] sm:$0xff]
    %v591 = vld [vmem:[#allocation7 + $0x1d0] sm:$0xff]
    %v592 = vld [vmem:[#allocation7 + $0x1d8] sm:$0xff]
    %v593 = vld [vmem:[#allocation7 + $0x1e0] sm:$0xff]
    %v594 = vld [vmem:[#allocation7 + $0x1e8] sm:$0xff]
    %v595 = vld [vmem:[#allocation7 + $0x1f0] sm:$0xff]
    %v596 = vld [vmem:[#allocation7 + $0x1f8] sm:$0xff]
    %v597 = vld [vmem:[%s6] sm:$0x3]
    %v599 = vlaneseq
    %v600 = vshrl.u32 %v599, 7
    %v601 = vsub.s32 0, %v600
    %v602 = vrot.slane %v597, %v601
    %v603 = vlaneseq
    %v604 = vshrl.u32 %v603, 7
    %v605 = vsub.s32 1, %v604
    %v606 = vrot.slane %v597, %v605
    %v673 = vunpack.c.l.b16 %v533
    %v674 = vunpack.c.h.b16 %v533
    %v675 = vunpack.c.l.b16 %v534
    %v676 = vunpack.c.h.b16 %v534
    %v677 = vunpack.c.l.b16 %v535
    %v678 = vunpack.c.h.b16 %v535
    %v679 = vunpack.c.l.b16 %v536
    %v680 = vunpack.c.h.b16 %v536
    %v681 = vunpack.c.l.b16 %v537
    %v682 = vunpack.c.h.b16 %v537
    %v683 = vunpack.c.l.b16 %v538
    %v684 = vunpack.c.h.b16 %v538
    %v685 = vunpack.c.l.b16 %v539
    %v686 = vunpack.c.h.b16 %v539
    %v687 = vunpack.c.l.b16 %v540
    %v688 = vunpack.c.h.b16 %v540
    %v689 = vunpack.c.l.b16 %v541
    %v690 = vunpack.c.h.b16 %v541
    %v691 = vunpack.c.l.b16 %v542
    %v692 = vunpack.c.h.b16 %v542
    %v693 = vunpack.c.l.b16 %v543
    %v694 = vunpack.c.h.b16 %v543
    %v695 = vunpack.c.l.b16 %v544
    %v696 = vunpack.c.h.b16 %v544
    %v697 = vunpack.c.l.b16 %v545
    %v698 = vunpack.c.h.b16 %v545
    %v699 = vunpack.c.l.b16 %v546
    %v700 = vunpack.c.h.b16 %v546
    %v701 = vunpack.c.l.b16 %v547
    %v702 = vunpack.c.h.b16 %v547
    %v703 = vunpack.c.l.b16 %v548
    %v704 = vunpack.c.h.b16 %v548
    %v705 = vunpack.c.l.b16 %v549
    %v706 = vunpack.c.h.b16 %v549
    %v707 = vunpack.c.l.b16 %v550
    %v708 = vunpack.c.h.b16 %v550
    %v709 = vunpack.c.l.b16 %v551
    %v710 = vunpack.c.h.b16 %v551
    %v711 = vunpack.c.l.b16 %v552
    %v712 = vunpack.c.h.b16 %v552
    %v713 = vunpack.c.l.b16 %v553
    %v714 = vunpack.c.h.b16 %v553
    %v715 = vunpack.c.l.b16 %v554
    %v716 = vunpack.c.h.b16 %v554
    %v717 = vunpack.c.l.b16 %v555
    %v718 = vunpack.c.h.b16 %v555
    %v719 = vunpack.c.l.b16 %v556
    %v720 = vunpack.c.h.b16 %v556
    %v721 = vunpack.c.l.b16 %v557
    %v722 = vunpack.c.h.b16 %v557
    %v723 = vunpack.c.l.b16 %v558
    %v724 = vunpack.c.h.b16 %v558
    %v725 = vunpack.c.l.b16 %v559
    %v726 = vunpack.c.h.b16 %v559
    %v727 = vunpack.c.l.b16 %v560
    %v728 = vunpack.c.h.b16 %v560
    %v729 = vunpack.c.l.b16 %v561
    %v730 = vunpack.c.h.b16 %v561
    %v731 = vunpack.c.l.b16 %v562
    %v732 = vunpack.c.h.b16 %v562
    %v733 = vunpack.c.l.b16 %v563
    %v734 = vunpack.c.h.b16 %v563
    %v735 = vunpack.c.l.b16 %v564
    %v736 = vunpack.c.h.b16 %v564
    %v737 = vunpack.c.l.b16 %v565
    %v738 = vunpack.c.h.b16 %v565
    %v739 = vunpack.c.l.b16 %v566
    %v740 = vunpack.c.h.b16 %v566
    %v741 = vunpack.c.l.b16 %v567
    %v742 = vunpack.c.h.b16 %v567
    %v743 = vunpack.c.l.b16 %v568
    %v744 = vunpack.c.h.b16 %v568
    %v745 = vunpack.c.l.b16 %v569
    %v746 = vunpack.c.h.b16 %v569
    %v747 = vunpack.c.l.b16 %v570
    %v748 = vunpack.c.h.b16 %v570
    %v749 = vunpack.c.l.b16 %v571
    %v750 = vunpack.c.h.b16 %v571
    %v751 = vunpack.c.l.b16 %v572
    %v752 = vunpack.c.h.b16 %v572
    %v753 = vunpack.c.l.b16 %v573
    %v754 = vunpack.c.h.b16 %v573
    %v755 = vunpack.c.l.b16 %v574
    %v756 = vunpack.c.h.b16 %v574
    %v757 = vunpack.c.l.b16 %v575
    %v758 = vunpack.c.h.b16 %v575
    %v759 = vunpack.c.l.b16 %v576
    %v760 = vunpack.c.h.b16 %v576
    %v761 = vunpack.c.l.b16 %v577
    %v762 = vunpack.c.h.b16 %v577
    %v763 = vunpack.c.l.b16 %v578
    %v764 = vunpack.c.h.b16 %v578
    %v765 = vunpack.c.l.b16 %v579
    %v766 = vunpack.c.h.b16 %v579
    %v767 = vunpack.c.l.b16 %v580
    %v768 = vunpack.c.h.b16 %v580
    %v769 = vunpack.c.l.b16 %v581
    %v770 = vunpack.c.h.b16 %v581
    %v771 = vunpack.c.l.b16 %v582
    %v772 = vunpack.c.h.b16 %v582
    %v773 = vunpack.c.l.b16 %v583
    %v774 = vunpack.c.h.b16 %v583
    %v775 = vunpack.c.l.b16 %v584
    %v776 = vunpack.c.h.b16 %v584
    %v777 = vunpack.c.l.b16 %v585
    %v778 = vunpack.c.h.b16 %v585
    %v779 = vunpack.c.l.b16 %v586
    %v780 = vunpack.c.h.b16 %v586
    %v781 = vunpack.c.l.b16 %v587
    %v782 = vunpack.c.h.b16 %v587
    %v783 = vunpack.c.l.b16 %v588
    %v784 = vunpack.c.h.b16 %v588
    %v785 = vunpack.c.l.b16 %v589
    %v786 = vunpack.c.h.b16 %v589
    %v787 = vunpack.c.l.b16 %v590
    %v788 = vunpack.c.h.b16 %v590
    %v789 = vunpack.c.l.b16 %v591
    %v790 = vunpack.c.h.b16 %v591
    %v791 = vunpack.c.l.b16 %v592
    %v792 = vunpack.c.h.b16 %v592
    %v793 = vunpack.c.l.b16 %v593
    %v794 = vunpack.c.h.b16 %v593
    %v795 = vunpack.c.l.b16 %v594
    %v796 = vunpack.c.h.b16 %v594
    %v797 = vunpack.c.l.b16 %v595
    %v798 = vunpack.c.h.b16 %v595
    %v799 = vunpack.c.l.b16 %v596
    %v800 = vunpack.c.h.b16 %v596
    %v801 = vpack.c.b16 %v675, %v673
    %v802 = vpack.c.b16 %v676, %v674
    %v803 = vpack.c.b16 %v679, %v677
    %v804 = vpack.c.b16 %v680, %v678
    %v805 = vpack.c.b16 %v683, %v681
    %v806 = vpack.c.b16 %v684, %v682
    %v807 = vpack.c.b16 %v687, %v685
    %v808 = vpack.c.b16 %v688, %v686
    %v809 = vpack.c.b16 %v691, %v689
    %v810 = vpack.c.b16 %v692, %v690
    %v811 = vpack.c.b16 %v695, %v693
    %v812 = vpack.c.b16 %v696, %v694
    %v813 = vpack.c.b16 %v699, %v697
    %v814 = vpack.c.b16 %v700, %v698
    %v815 = vpack.c.b16 %v703, %v701
    %v816 = vpack.c.b16 %v704, %v702
    %v817 = vpack.c.b16 %v707, %v705
    %v818 = vpack.c.b16 %v708, %v706
    %v819 = vpack.c.b16 %v711, %v709
    %v820 = vpack.c.b16 %v712, %v710
    %v821 = vpack.c.b16 %v715, %v713
    %v822 = vpack.c.b16 %v716, %v714
    %v823 = vpack.c.b16 %v719, %v717
    %v824 = vpack.c.b16 %v720, %v718
    %v825 = vpack.c.b16 %v723, %v721
    %v826 = vpack.c.b16 %v724, %v722
    %v827 = vpack.c.b16 %v727, %v725
    %v828 = vpack.c.b16 %v728, %v726
    %v829 = vpack.c.b16 %v731, %v729
    %v830 = vpack.c.b16 %v732, %v730
    %v831 = vpack.c.b16 %v735, %v733
    %v832 = vpack.c.b16 %v736, %v734
    %v833 = vpack.c.b16 %v739, %v737
    %v834 = vpack.c.b16 %v740, %v738
    %v835 = vpack.c.b16 %v743, %v741
    %v836 = vpack.c.b16 %v744, %v742
    %v837 = vpack.c.b16 %v747, %v745
    %v838 = vpack.c.b16 %v748, %v746
    %v839 = vpack.c.b16 %v751, %v749
    %v840 = vpack.c.b16 %v752, %v750
    %v841 = vpack.c.b16 %v755, %v753
    %v842 = vpack.c.b16 %v756, %v754
    %v843 = vpack.c.b16 %v759, %v757
    %v844 = vpack.c.b16 %v760, %v758
    %v845 = vpack.c.b16 %v763, %v761
    %v846 = vpack.c.b16 %v764, %v762
    %v847 = vpack.c.b16 %v767, %v765
    %v848 = vpack.c.b16 %v768, %v766
    %v849 = vpack.c.b16 %v771, %v769
    %v850 = vpack.c.b16 %v772, %v770
    %v851 = vpack.c.b16 %v775, %v773
    %v852 = vpack.c.b16 %v776, %v774
    %v853 = vpack.c.b16 %v779, %v777
    %v854 = vpack.c.b16 %v780, %v778
    %v855 = vpack.c.b16 %v783, %v781
    %v856 = vpack.c.b16 %v784, %v782
    %v857 = vpack.c.b16 %v787, %v785
    %v858 = vpack.c.b16 %v788, %v786
    %v859 = vpack.c.b16 %v791, %v789
    %v860 = vpack.c.b16 %v792, %v790
    %v861 = vpack.c.b16 %v795, %v793
    %v862 = vpack.c.b16 %v796, %v794
    %v863 = vpack.c.b16 %v799, %v797
    %v864 = vpack.c.b16 %v800, %v798
    %929 = vmatprep.subr.bf16.mxu0 %v802
    %930 = vmatpush1.bf16.msra.mxu0 %v801
    %931 = vmatprep.subr.bf16.mxu0 %v804
    %932 = vmatpush1.bf16.msra.mxu0 %v803
    %933 = vmatprep.subr.bf16.mxu0 %v806
    %934 = vmatpush1.bf16.msra.mxu0 %v805
    %935 = vmatprep.subr.bf16.mxu0 %v808
    %936 = vmatpush1.bf16.msra.mxu0 %v807
    %937 = vmatprep.subr.bf16.mxu0 %v810
    %938 = vmatpush1.bf16.msra.mxu0 %v809
    %939 = vmatprep.subr.bf16.mxu0 %v812
    %940 = vmatpush1.bf16.msra.mxu0 %v811
    %941 = vmatprep.subr.bf16.mxu0 %v814
    %942 = vmatpush1.bf16.msra.mxu0 %v813
    %943 = vmatprep.subr.bf16.mxu0 %v816
    %944 = vmatpush1.bf16.msra.mxu0 %v815
    %945 = vmatprep.subr.bf16.mxu0 %v818
    %946 = vmatpush1.bf16.msra.mxu0 %v817
    %947 = vmatprep.subr.bf16.mxu0 %v820
    %948 = vmatpush1.bf16.msra.mxu0 %v819
    %949 = vmatprep.subr.bf16.mxu0 %v822
    %950 = vmatpush1.bf16.msra.mxu0 %v821
    %951 = vmatprep.subr.bf16.mxu0 %v824
    %952 = vmatpush1.bf16.msra.mxu0 %v823
    %953 = vmatprep.subr.bf16.mxu0 %v826
    %954 = vmatpush1.bf16.msra.mxu0 %v825
    %955 = vmatprep.subr.bf16.mxu0 %v828
    %956 = vmatpush1.bf16.msra.mxu0 %v827
    %957 = vmatprep.subr.bf16.mxu0 %v830
    %958 = vmatpush1.bf16.msra.mxu0 %v829
    %959 = vmatprep.subr.bf16.mxu0 %v832
    %960 = vmatpush1.bf16.msra.mxu0 %v831
    %961 = vmatprep.mubr.bf16.mxu0 %v522
    %962 = vmatmul.mubr.bf16.gmra.mrb[0].mxu0 %v521
    %v963 = vpop.f32.mrb[0].mxu0
    %v964 = vadd.f32 %v602, %v963
    %v965 = vpop.f32.mrb[0].mxu0
    %v966 = vadd.f32 %v606, %v965
    %v967 = vpop.f32.mrb[0].mxu0
    %v968 = vadd.f32 %v602, %v967
    %v969 = vpop.f32.mrb[0].mxu0
    %v970 = vadd.f32 %v606, %v969
    %971 = vmatprep.mubr.bf16.mxu0 %v526
    %972 = vmatmul.mubr.bf16.gmra.mrb[0].mxu0 %v525
    %v973 = vpop.f32.mrb[0].mxu0
    %v974 = vadd.f32 %v602, %v973
    %v975 = vpop.f32.mrb[0].mxu0
    %v976 = vadd.f32 %v606, %v975
    %v977 = vpop.f32.mrb[0].mxu0
    %v978 = vadd.f32 %v602, %v977
    %v979 = vpop.f32.mrb[0].mxu0
    %v980 = vadd.f32 %v606, %v979
    %981 = vmatprep.mubr.bf16.mxu0 %v530
    %982 = vmatmul.mubr.bf16.gmra.mrb[0].mxu0 %v529
    %v983 = vpop.f32.mrb[0].mxu0
    %v984 = vadd.f32 %v602, %v983
    %v985 = vpop.f32.mrb[0].mxu0
    %v986 = vadd.f32 %v606, %v985
    %v987 = vpop.f32.mrb[0].mxu0
    %v988 = vadd.f32 %v602, %v987
    %v989 = vpop.f32.mrb[0].mxu0
    %v990 = vadd.f32 %v606, %v989
    %991 = vdwg.mxu0
    %992 = vmatprep.subr.bf16.mxu0 %v834
    %993 = vmatpush1.bf16.msra.mxu0 %v833
    %994 = vmatprep.subr.bf16.mxu0 %v836
    %995 = vmatpush1.bf16.msra.mxu0 %v835
    %996 = vmatprep.subr.bf16.mxu0 %v838
    %997 = vmatpush1.bf16.msra.mxu0 %v837
    %998 = vmatprep.subr.bf16.mxu0 %v840
    %999 = vmatpush1.bf16.msra.mxu0 %v839
    %1000 = vmatprep.subr.bf16.mxu0 %v842
    %1001 = vmatpush1.bf16.msra.mxu0 %v841
    %1002 = vmatprep.subr.bf16.mxu0 %v844
    %1003 = vmatpush1.bf16.msra.mxu0 %v843
    %1004 = vmatprep.subr.bf16.mxu0 %v846
    %1005 = vmatpush1.bf16.msra.mxu0 %v845
    %1006 = vmatprep.subr.bf16.mxu0 %v848
    %1007 = vmatpush1.bf16.msra.mxu0 %v847
    %1008 = vmatprep.subr.bf16.mxu0 %v850
    %1009 = vmatpush1.bf16.msra.mxu0 %v849
    %1010 = vmatprep.subr.bf16.mxu0 %v852
    %1011 = vmatpush1.bf16.msra.mxu0 %v851
    %1012 = vmatprep.subr.bf16.mxu0 %v854
    %1013 = vmatpush1.bf16.msra.mxu0 %v853
    %1014 = vmatprep.subr.bf16.mxu0 %v856
    %1015 = vmatpush1.bf16.msra.mxu0 %v855
    %1016 = vmatprep.subr.bf16.mxu0 %v858
    %1017 = vmatpush1.bf16.msra.mxu0 %v857
    %1018 = vmatprep.subr.bf16.mxu0 %v860
    %1019 = vmatpush1.bf16.msra.mxu0 %v859
    %1020 = vmatprep.subr.bf16.mxu0 %v862
    %1021 = vmatpush1.bf16.msra.mxu0 %v861
    %1022 = vmatprep.subr.bf16.mxu0 %v864
    %1023 = vmatpush1.bf16.msra.mxu0 %v863
    %1024 = vmatprep.mubr.bf16.mxu0 %v524
    %1025 = vmatmul.mubr.bf16.gmra.mrb[0].mxu0 %v523
    %v1026 = vpop.f32.mrb[0].mxu0
    %v1027 = vadd.f32 %v964, %v1026
    %v1028 = vpop.f32.mrb[0].mxu0
    %v1029 = vadd.f32 %v966, %v1028
    %v1030 = vpop.f32.mrb[0].mxu0
    %v1031 = vadd.f32 %v968, %v1030
    %v1032 = vpop.f32.mrb[0].mxu0
    %v1033 = vadd.f32 %v970, %v1032
    %1034 = vmatprep.mubr.bf16.mxu0 %v528
    %1035 = vmatmul.mubr.bf16.gmra.mrb[0].mxu0 %v527
    %v1036 = vpop.f32.mrb[0].mxu0
    %v1037 = vadd.f32 %v974, %v1036
    %v1038 = vpop.f32.mrb[0].mxu0
    %v1039 = vadd.f32 %v976, %v1038
    %v1040 = vpop.f32.mrb[0].mxu0
    %v1041 = vadd.f32 %v978, %v1040
    %v1042 = vpop.f32.mrb[0].mxu0
    %v1043 = vadd.f32 %v980, %v1042
    %1044 = vmatprep.mubr.bf16.mxu0 %v532
    %1045 = vmatmul.mubr.bf16.gmra.mrb[0].mxu0 %v531
    %v1046 = vpop.f32.mrb[0].mxu0
    %v1047 = vadd.f32 %v984, %v1046
    %v1048 = vpop.f32.mrb[0].mxu0
    %v1049 = vadd.f32 %v986, %v1048
    %v1050 = vpop.f32.mrb[0].mxu0
    %v1051 = vadd.f32 %v988, %v1050
    %v1052 = vpop.f32.mrb[0].mxu0
    %v1053 = vadd.f32 %v990, %v1052
    %1054 = vdwg.mxu0
    %v1055 = vmax.f32 %v1027, 0.0
    %v1056 = vmax.f32 %v1029, 0.0
    %v1057 = vmax.f32 %v1031, 0.0
    %v1058 = vmax.f32 %v1033, 0.0
    %v1059 = vmax.f32 %v1037, 0.0
    %v1060 = vmax.f32 %v1039, 0.0
    %v1061 = vmax.f32 %v1041, 0.0
    %v1062 = vmax.f32 %v1043, 0.0
    %v1063 = vmax.f32 %v1047, 0.0
    %v1064 = vmax.f32 %v1049, 0.0
    %v1065 = vmax.f32 %v1051, 0.0
    %v1066 = vmax.f32 %v1053, 0.0
    %v1067 = vpack.c.bf16 %v1057, %v1055
    %v1068 = vpack.c.bf16 %v1058, %v1056
    %v1069 = vpack.c.bf16 %v1061, %v1059
    %v1070 = vpack.c.bf16 %v1062, %v1060
    %v1071 = vpack.c.bf16 %v1065, %v1063
    %v1072 = vpack.c.bf16 %v1066, %v1064
    %v1073 = vld [vmem:[%s7] sm:$0xf]
    %v1074 = vld [vmem:[%s7 + $0x4] sm:$0xf]
    %v1075 = vld [vmem:[%s7 + $0x8] sm:$0xf]
    %v1076 = vld [vmem:[%s7 + $0xc] sm:$0xf]
    %v1077 = vld [vmem:[%s7 + $0x10] sm:$0xf]
    %v1078 = vld [vmem:[%s7 + $0x14] sm:$0xf]
    %v1079 = vld [vmem:[%s7 + $0x18] sm:$0xf]
    %v1080 = vld [vmem:[%s7 + $0x1c] sm:$0xf]
    %v1081 = vld [vmem:[%s7 + $0x20] sm:$0xf]
    %v1082 = vld [vmem:[%s7 + $0x24] sm:$0xf]
    %v1083 = vld [vmem:[%s7 + $0x28] sm:$0xf]
    %v1084 = vld [vmem:[%s7 + $0x2c] sm:$0xf]
    %v1085 = vld [vmem:[%s7 + $0x30] sm:$0xf]
    %v1086 = vld [vmem:[%s7 + $0x34] sm:$0xf]
    %v1087 = vld [vmem:[%s7 + $0x38] sm:$0xf]
    %v1088 = vld [vmem:[%s7 + $0x3c] sm:$0xf]
    %v1089 = vld [vmem:[%s7 + $0x40] sm:$0xf]
    %v1090 = vld [vmem:[%s7 + $0x44] sm:$0xf]
    %v1091 = vld [vmem:[%s7 + $0x48] sm:$0xf]
    %v1092 = vld [vmem:[%s7 + $0x4c] sm:$0xf]
    %v1093 = vld [vmem:[%s7 + $0x50] sm:$0xf]
    %v1094 = vld [vmem:[%s7 + $0x54] sm:$0xf]
    %v1095 = vld [vmem:[%s7 + $0x58] sm:$0xf]
    %v1096 = vld [vmem:[%s7 + $0x5c] sm:$0xf]
    %v1097 = vld [vmem:[%s7 + $0x60] sm:$0xf]
    %v1098 = vld [vmem:[%s7 + $0x64] sm:$0xf]
    %v1099 = vld [vmem:[%s7 + $0x68] sm:$0xf]
    %v1100 = vld [vmem:[%s7 + $0x6c] sm:$0xf]
    %v1101 = vld [vmem:[%s7 + $0x70] sm:$0xf]
    %v1102 = vld [vmem:[%s7 + $0x74] sm:$0xf]
    %v1103 = vld [vmem:[%s7 + $0x78] sm:$0xf]
    %v1104 = vld [vmem:[%s7 + $0x7c] sm:$0xf]
    %v1105 = vld [vmem:[%s8] sm:$0x1]
    %v1107 = vlaneseq
    %v1108 = vshrl.u32 %v1107, 7
    %v1109 = vsub.s32 0, %v1108
    %v1110 = vrot.slane %v1105, %v1109
    %v1144 = vunpack.c.l.b16 %v1073
    %v1145 = vunpack.c.l.b16 %v1074
    %v1146 = vunpack.c.l.b16 %v1075
    %v1147 = vunpack.c.l.b16 %v1076
    %v1148 = vunpack.c.l.b16 %v1077
    %v1149 = vunpack.c.l.b16 %v1078
    %v1150 = vunpack.c.l.b16 %v1079
    %v1151 = vunpack.c.l.b16 %v1080
    %v1152 = vunpack.c.l.b16 %v1081
    %v1153 = vunpack.c.l.b16 %v1082
    %v1154 = vunpack.c.l.b16 %v1083
    %v1155 = vunpack.c.l.b16 %v1084
    %v1156 = vunpack.c.l.b16 %v1085
    %v1157 = vunpack.c.l.b16 %v1086
    %v1158 = vunpack.c.l.b16 %v1087
    %v1159 = vunpack.c.l.b16 %v1088
    %v1160 = vunpack.c.l.b16 %v1089
    %v1161 = vunpack.c.l.b16 %v1090
    %v1162 = vunpack.c.l.b16 %v1091
    %v1163 = vunpack.c.l.b16 %v1092
    %v1164 = vunpack.c.l.b16 %v1093
    %v1165 = vunpack.c.l.b16 %v1094
    %v1166 = vunpack.c.l.b16 %v1095
    %v1167 = vunpack.c.l.b16 %v1096
    %v1168 = vunpack.c.l.b16 %v1097
    %v1169 = vunpack.c.l.b16 %v1098
    %v1170 = vunpack.c.l.b16 %v1099
    %v1171 = vunpack.c.l.b16 %v1100
    %v1172 = vunpack.c.l.b16 %v1101
    %v1173 = vunpack.c.l.b16 %v1102
    %v1174 = vunpack.c.l.b16 %v1103
    %v1175 = vunpack.c.l.b16 %v1104
    %v1176 = vpack.c.b16 %v1145, %v1144
    %v1177 = vpack.c.b16 %v1147, %v1146
    %v1178 = vpack.c.b16 %v1149, %v1148
    %v1179 = vpack.c.b16 %v1151, %v1150
    %v1180 = vpack.c.b16 %v1153, %v1152
    %v1181 = vpack.c.b16 %v1155, %v1154
    %v1182 = vpack.c.b16 %v1157, %v1156
    %v1183 = vpack.c.b16 %v1159, %v1158
    %v1184 = vpack.c.b16 %v1161, %v1160
    %v1185 = vpack.c.b16 %v1163, %v1162
    %v1186 = vpack.c.b16 %v1165, %v1164
    %v1187 = vpack.c.b16 %v1167, %v1166
    %v1188 = vpack.c.b16 %v1169, %v1168
    %v1189 = vpack.c.b16 %v1171, %v1170
    %v1190 = vpack.c.b16 %v1173, %v1172
    %v1191 = vpack.c.b16 %v1175, %v1174
    %1208 = vmatprep.subr.bf16.mxu0 0
    %1209 = vmatpush1.bf16.msra.mxu0 %v1176
    %1210 = vmatprep.subr.bf16.mxu0 0
    %1211 = vmatpush1.bf16.msra.mxu0 %v1177
    %1212 = vmatprep.subr.bf16.mxu0 0
    %1213 = vmatpush1.bf16.msra.mxu0 %v1178
    %1214 = vmatprep.subr.bf16.mxu0 0
    %1215 = vmatpush1.bf16.msra.mxu0 %v1179
    %1216 = vmatprep.subr.bf16.mxu0 0
    %1217 = vmatpush1.bf16.msra.mxu0 %v1180
    %1218 = vmatprep.subr.bf16.mxu0 0
    %1219 = vmatpush1.bf16.msra.mxu0 %v1181
    %1220 = vmatprep.subr.bf16.mxu0 0
    %1221 = vmatpush1.bf16.msra.mxu0 %v1182
    %1222 = vmatprep.subr.bf16.mxu0 0
    %1223 = vmatpush1.bf16.msra.mxu0 %v1183
    %1224 = vmatprep.subr.bf16.mxu0 0
    %1225 = vmatpush1.bf16.msra.mxu0 %v1184
    %1226 = vmatprep.subr.bf16.mxu0 0
    %1227 = vmatpush1.bf16.msra.mxu0 %v1185
    %1228 = vmatprep.subr.bf16.mxu0 0
    %1229 = vmatpush1.bf16.msra.mxu0 %v1186
    %1230 = vmatprep.subr.bf16.mxu0 0
    %1231 = vmatpush1.bf16.msra.mxu0 %v1187
    %1232 = vmatprep.subr.bf16.mxu0 0
    %1233 = vmatpush1.bf16.msra.mxu0 %v1188
    %1234 = vmatprep.subr.bf16.mxu0 0
    %1235 = vmatpush1.bf16.msra.mxu0 %v1189
    %1236 = vmatprep.subr.bf16.mxu0 0
    %1237 = vmatpush1.bf16.msra.mxu0 %v1190
    %1238 = vmatprep.subr.bf16.mxu0 0
    %1239 = vmatpush1.bf16.msra.mxu0 %v1191
    %1240 = vmatprep.mubr.bf16.mxu0 %v1068
    %1241 = vmatmul.mubr.bf16.gmra.mrb[0].mxu0 %v1067
    %v1242 = vpop.f32.mrb[0].mxu0
    %v1243 = vadd.f32 %v1110, %v1242
    %v1244 = vpop.f32.mrb[0].mxu0
    %v1245 = vpop.f32.mrb[0].mxu0
    %v1246 = vadd.f32 %v1110, %v1245
    %v1247 = vpop.f32.mrb[0].mxu0
    %1248 = vmatprep.mubr.bf16.mxu0 %v1070
    %1249 = vmatmul.mubr.bf16.gmra.mrb[0].mxu0 %v1069
    %v1250 = vpop.f32.mrb[0].mxu0
    %v1251 = vadd.f32 %v1110, %v1250
    %v1252 = vpop.f32.mrb[0].mxu0
    %v1253 = vpop.f32.mrb[0].mxu0
    %v1254 = vadd.f32 %v1110, %v1253
    %v1255 = vpop.f32.mrb[0].mxu0
    %1256 = vmatprep.mubr.bf16.mxu0 %v1072
    %1257 = vmatmul.mubr.bf16.gmra.mrb[0].mxu0 %v1071
    %v1258 = vpop.f32.mrb[0].mxu0
    %v1259 = vadd.f32 %v1110, %v1258
    %v1260 = vpop.f32.mrb[0].mxu0
    %v1261 = vpop.f32.mrb[0].mxu0
    %v1262 = vadd.f32 %v1110, %v1261
    %v1263 = vpop.f32.mrb[0].mxu0
    %1264 = vdwg.mxu0
    %v1265 = vmax.f32 %v1243, 0.0
    %v1266 = vmax.f32 %v1246, 0.0
    %v1267 = vmax.f32 %v1251, 0.0
    %v1268 = vmax.f32 %v1254, 0.0
    %v1269 = vmax.f32 %v1259, 0.0
    %v1270 = vmax.f32 %v1262, 0.0
    %v1271 = vpack.c.bf16 %v1266, %v1265
    %v1272 = vpack.c.bf16 %v1268, %v1267
    %v1273 = vpack.c.bf16 %v1270, %v1269
    %v1274 = vld [vmem:[#allocation8] sm:$0xf]
    %v1275 = vld [vmem:[#allocation8 + $0x4] sm:$0xf]
    %v1276 = vld [vmem:[#allocation8 + $0x8] sm:$0xf]
    %v1277 = vld [vmem:[#allocation8 + $0xc] sm:$0xf]
    %v1278 = vld [vmem:[#allocation8 + $0x10] sm:$0xf]
    %v1279 = vld [vmem:[#allocation8 + $0x14] sm:$0xf]
    %v1280 = vld [vmem:[#allocation8 + $0x18] sm:$0xf]
    %v1281 = vld [vmem:[#allocation8 + $0x1c] sm:$0xf]
    %v1282 = vld [vmem:[#allocation8 + $0x20] sm:$0xf]
    %v1283 = vld [vmem:[#allocation8 + $0x24] sm:$0xf]
    %v1284 = vld [vmem:[#allocation8 + $0x28] sm:$0xf]
    %v1285 = vld [vmem:[#allocation8 + $0x2c] sm:$0xf]
    %v1286 = vld [vmem:[#allocation8 + $0x30] sm:$0xf]
    %v1287 = vld [vmem:[#allocation8 + $0x34] sm:$0xf]
    %v1288 = vld [vmem:[#allocation8 + $0x38] sm:$0xf]
    %v1289 = vld [vmem:[#allocation8 + $0x3c] sm:$0xf]
    %v1290 = vld [vmem:[%s10] sm:$0x1]
    %v1292 = vlaneseq
    %v1293 = vshrl.u32 %v1292, 7
    %v1294 = vsub.s32 0, %v1293
    %v1295 = vrot.slane %v1290, %v1294
    %v1313 = vunpack.c.l.b16 %v1274
    %v1314 = vunpack.c.l.b16 %v1275
    %v1315 = vunpack.c.l.b16 %v1276
    %v1316 = vunpack.c.l.b16 %v1277
    %v1317 = vunpack.c.l.b16 %v1278
    %v1318 = vunpack.c.l.b16 %v1279
    %v1319 = vunpack.c.l.b16 %v1280
    %v1320 = vunpack.c.l.b16 %v1281
    %v1321 = vunpack.c.l.b16 %v1282
    %v1322 = vunpack.c.l.b16 %v1283
    %v1323 = vunpack.c.l.b16 %v1284
    %v1324 = vunpack.c.l.b16 %v1285
    %v1325 = vunpack.c.l.b16 %v1286
    %v1326 = vunpack.c.l.b16 %v1287
    %v1327 = vunpack.c.l.b16 %v1288
    %v1328 = vunpack.c.l.b16 %v1289
    %v1329 = vpack.c.b16 %v1314, %v1313
    %v1330 = vpack.c.b16 %v1316, %v1315
    %v1331 = vpack.c.b16 %v1318, %v1317
    %v1332 = vpack.c.b16 %v1320, %v1319
    %v1333 = vpack.c.b16 %v1322, %v1321
    %v1334 = vpack.c.b16 %v1324, %v1323
    %v1335 = vpack.c.b16 %v1326, %v1325
    %v1336 = vpack.c.b16 %v1328, %v1327
    %1345 = vmatprep.subr.bf16.mxu0 0
    %1346 = vmatpush1.bf16.msra.mxu0 %v1329
    %1347 = vmatprep.subr.bf16.mxu0 0
    %1348 = vmatpush1.bf16.msra.mxu0 %v1330
    %1349 = vmatprep.subr.bf16.mxu0 0
    %1350 = vmatpush1.bf16.msra.mxu0 %v1331
    %1351 = vmatprep.subr.bf16.mxu0 0
    %1352 = vmatpush1.bf16.msra.mxu0 %v1332
    %1353 = vmatprep.subr.bf16.mxu0 0
    %1354 = vmatpush1.bf16.msra.mxu0 %v1333
    %1355 = vmatprep.subr.bf16.mxu0 0
    %1356 = vmatpush1.bf16.msra.mxu0 %v1334
    %1357 = vmatprep.subr.bf16.mxu0 0
    %1358 = vmatpush1.bf16.msra.mxu0 %v1335
    %1359 = vmatprep.subr.bf16.mxu0 0
    %1360 = vmatpush1.bf16.msra.mxu0 %v1336
    %1361 = vmatprep.subr.bf16.mxu0 0
    %1362 = vmatpush1.bf16.msra.mxu0 0
    %1363 = vmatprep.subr.bf16.mxu0 0
    %1364 = vmatpush1.bf16.msra.mxu0 0
    %1365 = vmatprep.subr.bf16.mxu0 0
    %1366 = vmatpush1.bf16.msra.mxu0 0
    %1367 = vmatprep.subr.bf16.mxu0 0
    %1368 = vmatpush1.bf16.msra.mxu0 0
    %1369 = vmatprep.subr.bf16.mxu0 0
    %1370 = vmatpush1.bf16.msra.mxu0 0
    %1371 = vmatprep.subr.bf16.mxu0 0
    %1372 = vmatpush1.bf16.msra.mxu0 0
    %1373 = vmatprep.subr.bf16.mxu0 0
    %1374 = vmatpush1.bf16.msra.mxu0 0
    %1375 = vmatprep.subr.bf16.mxu0 0
    %1376 = vmatpush1.bf16.msra.mxu0 0
    %1377 = vmatprep.mubr.bf16.mxu0 0
    %1378 = vmatmul.mubr.bf16.gmra.mrb[0].mxu0 %v1271
    %v1379 = vpop.f32.mrb[0].mxu0
    %v1380 = vadd.f32 %v1295, %v1379
    %v1381 = vpop.f32.mrb[0].mxu0
    %v1382 = vpop.f32.mrb[0].mxu0
    %v1383 = vadd.f32 %v1295, %v1382
    %v1384 = vpop.f32.mrb[0].mxu0
    %1385 = vmatprep.mubr.bf16.mxu0 0
    %1386 = vmatmul.mubr.bf16.gmra.mrb[0].mxu0 %v1272
    %v1387 = vpop.f32.mrb[0].mxu0
    %v1388 = vadd.f32 %v1295, %v1387
    %v1389 = vpop.f32.mrb[0].mxu0
    %v1390 = vpop.f32.mrb[0].mxu0
    %v1391 = vadd.f32 %v1295, %v1390
    %v1392 = vpop.f32.mrb[0].mxu0
    %1393 = vmatprep.mubr.bf16.mxu0 0
    %1394 = vmatmul.mubr.bf16.gmra.mrb[0].mxu0 %v1273
    %v1395 = vpop.f32.mrb[0].mxu0
    %v1396 = vadd.f32 %v1295, %v1395
    %v1397 = vpop.f32.mrb[0].mxu0
    %v1398 = vpop.f32.mrb[0].mxu0
    %v1399 = vadd.f32 %v1295, %v1398
    %v1400 = vpop.f32.mrb[0].mxu0
    %1401 = vdwg.mxu0
    %v1402 = vmax.f32 %v1380, 0.0
    %v1403 = vmax.f32 %v1383, 0.0
    %v1404 = vmax.f32 %v1388, 0.0
    %v1405 = vmax.f32 %v1391, 0.0
    %v1406 = vmax.f32 %v1396, 0.0
    %v1407 = vmax.f32 %v1399, 0.0
    %v1408 = vpack.c.bf16 %v1403, %v1402
    %v1409 = vpack.c.bf16 %v1405, %v1404
    %v1410 = vpack.c.bf16 %v1407, %v1406
    %v1411 = vld [vmem:[#allocation10] sm:$0xf]
    %v1412 = vld [vmem:[#allocation10 + $0x4] sm:$0xf]
    %v1413 = vld [vmem:[#allocation10 + $0x8] sm:$0xf]
    %v1414 = vld [vmem:[#allocation10 + $0xc] sm:$0xf]
    %v1415 = vld [vmem:[#allocation10 + $0x10] sm:$0xf]
    %v1416 = vld [vmem:[#allocation10 + $0x14] sm:$0xf]
    %v1417 = vld [vmem:[#allocation10 + $0x18] sm:$0xf]
    %v1418 = vld [vmem:[#allocation10 + $0x1c] sm:$0xf]
    %v1419 = vld [vmem:[#allocation10 + $0x20] sm:$0xf]
    %v1420 = vld [vmem:[#allocation10 + $0x24] sm:$0xf]
    %v1421 = vld [vmem:[#allocation10 + $0x28] sm:$0xf]
    %v1422 = vld [vmem:[#allocation10 + $0x2c] sm:$0xf]
    %v1423 = vld [vmem:[#allocation10 + $0x30] sm:$0xf]
    %v1424 = vld [vmem:[#allocation10 + $0x34] sm:$0xf]
    %v1425 = vld [vmem:[#allocation10 + $0x38] sm:$0xf]
    %v1426 = vld [vmem:[#allocation10 + $0x3c] sm:$0xf]
    %v1427 = vld [vmem:[%s12] sm:$0x1]
    %v1429 = vlaneseq
    %v1430 = vshrl.u32 %v1429, 7
    %v1431 = vsub.s32 0, %v1430
    %v1432 = vrot.slane %v1427, %v1431
    %v1450 = vunpack.c.l.b16 %v1411
    %v1451 = vunpack.c.l.b16 %v1412
    %v1452 = vunpack.c.l.b16 %v1413
    %v1453 = vunpack.c.l.b16 %v1414
    %v1454 = vunpack.c.l.b16 %v1415
    %v1455 = vunpack.c.l.b16 %v1416
    %v1456 = vunpack.c.l.b16 %v1417
    %v1457 = vunpack.c.l.b16 %v1418
    %v1458 = vunpack.c.l.b16 %v1419
    %v1459 = vunpack.c.l.b16 %v1420
    %v1460 = vunpack.c.l.b16 %v1421
    %v1461 = vunpack.c.l.b16 %v1422
    %v1462 = vunpack.c.l.b16 %v1423
    %v1463 = vunpack.c.l.b16 %v1424
    %v1464 = vunpack.c.l.b16 %v1425
    %v1465 = vunpack.c.l.b16 %v1426
    %v1466 = vpack.c.b16 %v1451, %v1450
    %v1467 = vpack.c.b16 %v1453, %v1452
    %v1468 = vpack.c.b16 %v1455, %v1454
    %v1469 = vpack.c.b16 %v1457, %v1456
    %v1470 = vpack.c.b16 %v1459, %v1458
    %v1471 = vpack.c.b16 %v1461, %v1460
    %v1472 = vpack.c.b16 %v1463, %v1462
    %v1473 = vpack.c.b16 %v1465, %v1464
    %1482 = vmatprep.subr.bf16.mxu0 0
    %1483 = vmatpush1.bf16.msra.mxu0 %v1466
    %1484 = vmatprep.subr.bf16.mxu0 0
    %1485 = vmatpush1.bf16.msra.mxu0 %v1467
    %1486 = vmatprep.subr.bf16.mxu0 0
    %1487 = vmatpush1.bf16.msra.mxu0 %v1468
    %1488 = vmatprep.subr.bf16.mxu0 0
    %1489 = vmatpush1.bf16.msra.mxu0 %v1469
    %1490 = vmatprep.subr.bf16.mxu0 0
    %1491 = vmatpush1.bf16.msra.mxu0 %v1470
    %1492 = vmatprep.subr.bf16.mxu0 0
    %1493 = vmatpush1.bf16.msra.mxu0 %v1471
    %1494 = vmatprep.subr.bf16.mxu0 0
    %1495 = vmatpush1.bf16.msra.mxu0 %v1472
    %1496 = vmatprep.subr.bf16.mxu0 0
    %1497 = vmatpush1.bf16.msra.mxu0 %v1473
    %1498 = vmatprep.subr.bf16.mxu0 0
    %1499 = vmatpush1.bf16.msra.mxu0 0
    %1500 = vmatprep.subr.bf16.mxu0 0
    %1501 = vmatpush1.bf16.msra.mxu0 0
    %1502 = vmatprep.subr.bf16.mxu0 0
    %1503 = vmatpush1.bf16.msra.mxu0 0
    %1504 = vmatprep.subr.bf16.mxu0 0
    %1505 = vmatpush1.bf16.msra.mxu0 0
    %1506 = vmatprep.subr.bf16.mxu0 0
    %1507 = vmatpush1.bf16.msra.mxu0 0
    %1508 = vmatprep.subr.bf16.mxu0 0
    %1509 = vmatpush1.bf16.msra.mxu0 0
    %1510 = vmatprep.subr.bf16.mxu0 0
    %1511 = vmatpush1.bf16.msra.mxu0 0
    %1512 = vmatprep.subr.bf16.mxu0 0
    %1513 = vmatpush1.bf16.msra.mxu0 0
    %1514 = vmatprep.mubr.bf16.mxu0 0
    %1515 = vmatmul.mubr.bf16.gmra.mrb[0].mxu0 %v1408
    %v1516 = vpop.f32.mrb[0].mxu0
    %v1517 = vadd.f32 %v1432, %v1516
    %v1518 = vpop.f32.mrb[0].mxu0
    %v1519 = vpop.f32.mrb[0].mxu0
    %v1520 = vadd.f32 %v1432, %v1519
    %v1521 = vpop.f32.mrb[0].mxu0
    %1522 = vmatprep.mubr.bf16.mxu0 0
    %1523 = vmatmul.mubr.bf16.gmra.mrb[0].mxu0 %v1409
    %v1524 = vpop.f32.mrb[0].mxu0
    %v1525 = vadd.f32 %v1432, %v1524
    %v1526 = vpop.f32.mrb[0].mxu0
    %v1527 = vpop.f32.mrb[0].mxu0
    %v1528 = vadd.f32 %v1432, %v1527
    %v1529 = vpop.f32.mrb[0].mxu0
    %1530 = vmatprep.mubr.bf16.mxu0 0
    %1531 = vmatmul.mubr.bf16.gmra.mrb[0].mxu0 %v1410
    %v1532 = vpop.f32.mrb[0].mxu0
    %v1533 = vadd.f32 %v1432, %v1532
    %v1534 = vpop.f32.mrb[0].mxu0
    %v1535 = vpop.f32.mrb[0].mxu0
    %v1536 = vadd.f32 %v1432, %v1535
    %v1537 = vpop.f32.mrb[0].mxu0
    %1538 = vdwg.mxu0
    %v1539 = vsub.f32 0.0, %v1517
    %v1540 = vsub.f32 0.0, %v1520
    %v1541 = vsub.f32 0.0, %v1525
    %v1542 = vsub.f32 0.0, %v1528
    %v1543 = vsub.f32 0.0, %v1533
    %v1544 = vsub.f32 0.0, %v1536
    %v1545 = vmul.f32 %v1539, 1.442695
    %v1546 = vpow.pop %v1545
    %v1547 = vmul.f32 %v1540, 1.442695
    %v1548 = vpow.pop %v1547
    %v1549 = vmul.f32 %v1541, 1.442695
    %v1550 = vpow.pop %v1549
    %v1551 = vmul.f32 %v1542, 1.442695
    %v1552 = vpow.pop %v1551
    %v1553 = vmul.f32 %v1543, 1.442695
    %v1554 = vpow.pop %v1553
    %v1555 = vmul.f32 %v1544, 1.442695
    %v1556 = vpow.pop %v1555
    %v1557 = vadd.f32 %v1546, 1.0
    %v1558 = vadd.f32 %v1548, 1.0
    %v1559 = vadd.f32 %v1550, 1.0
    %v1560 = vadd.f32 %v1552, 1.0
    %v1561 = vadd.f32 %v1554, 1.0
    %v1562 = vadd.f32 %v1556, 1.0
    %v1563 = vrcp.pop %v1557
    %v1564 = vrcp.pop %v1558
    %v1565 = vrcp.pop %v1559
    %v1566 = vrcp.pop %v1560
    %v1567 = vrcp.pop %v1561
    %v1568 = vrcp.pop %v1562
    %1569 = vst [vmem:[#allocation11] sm:$0xff] %v1563
    %1570 = vst [vmem:[#allocation11 + $0x8] sm:$0xff] %v1564
    %1571 = vst [vmem:[#allocation11 + $0x10] sm:$0xff] %v1565
    %1572 = vst [vmem:[#allocation11 + $0x18] sm:$0xff] %v1566
    %1573 = vst [vmem:[#allocation11 + $0x20] sm:$0xff] %v1567
    %1574 = vst [vmem:[#allocation11 + $0x28] sm:$0xff] %v1568
    // Predicated region
    $region74: #{tpu_custom_call.1} parent=1 // pred_check
      _
    $region75: #{tpu_custom_call.1} parent=1 // pred_check_branch
      %1576 = sbr.rel (0) target = $region77
    $region76: #{tpu_custom_call.1} parent=1 // pred_region
      %s1578 = ssub.s32 768, 768
      %1579 = vsyncadd [#allocation4], %s1578
      %s1580 = sshll.u32 [#allocation11], 4
      %s1581 = int_to_ptr.vmem [resolvable:$true] %s1580
      %1586 = dma.vmem_to_hbm [thread:$0]  %s1581, 768, %s13, [#allocation4], 128, 128, 8
    $region77: #{tpu_custom_call.1} parent=1 // pred_fallthru
      _
    // Predicated region
    $region78: #{tpu_custom_call.1} parent=1 // pred_check
      _
    $region79: #{tpu_custom_call.1} parent=1 // pred_check_branch
      %1588 = sbr.rel (0) target = $region81
    $region80: #{tpu_custom_call.1} parent=1 // pred_region
      %1589 = dma.done [#allocation4], 768
    $region81: #{tpu_custom_call.1} parent=1 // pred_fallthru
      _
    %1590 = vsyncpa [#allocation3], 1
    %1591 = vsyncpa [#allocation6], 1
    %1592 = vsyncpa [#allocation9], 1
    %1593 = vsyncpa [#allocation4], 1

</llo_original>
